<compile_context>
chip_gen: v5e
topology: v5e:2x2
jax: 0.10.0
libtpu: 0.0.40
codegen_flags: <defaults>
</compile_context>

<pallas_src>
import functools

import jax
import jax.numpy as jnp
import numpy as np
from jax import lax
from jax.experimental import pallas as pl
from jax.experimental.pallas import tpu as pltpu

BIAS = 1e-4
LAMDA = 1e-3
_VMEM_LIMIT = 32 * 1024 * 1024  # explicit; > v5e's 16 MiB default, safe on v7x


def _round_up(x, m):
    return (x + m - 1) // m * m


def _pick_tile(n128, cap=512):
    """Pick a lane tile (multiple of 128, <= cap) that divides n128.

    Prefers the largest tile that still yields >= 2 grid steps so the leading
    "parallel" axis can be sharded across both v7x TensorCores; falls back to
    the largest dividing tile (single step) for tiny extents.
    """
    cands = [t for t in (512, 384, 256, 128) if t <= cap and n128 % t == 0]
    multi = [t for t in cands if n128 // t >= 2]
    return multi[0] if multi else cands[0]


# ----------------------------------------------------------------------------
# Shared in-kernel helpers: weighted squared distance via ONE lane-dense matmul.
#
#   d2[i, j] = sum_m (w[m,i] * (x[m,j] - sv[m,i]))**2
#            = sum_m w2*x^2  -  2*sum_m w2*sv*x  +  sum_m w2*sv^2
#
# All three terms fold into a single dot_general by concatenating the small
# contraction (feature) axis.  The kernels are EUP-bound (exp + sqrt per
# output element), so this MXU/VPU work is free filler at small M.
# ----------------------------------------------------------------------------
def _sqdist_lhs(w, sv):
    w2 = w * w
    return jnp.concatenate([w2, w2 * sv, w2 * (sv * sv)], axis=0)        # (3M, TI)


def _sqdist_rhs(x):
    return jnp.concatenate([x * x, -2.0 * x, jnp.ones_like(x)], axis=0)  # (3M, TJ)


def _sqdist_from_parts(lhs, rhs):
    dn = (((0,), (0,)), ((), ()))  # contract over the (3M) feature axis
    d2 = lax.dot_general(lhs, rhs, dn, preferred_element_type=jnp.float32)
    # Clamp tiny negative roundoff from the expanded form before sqrt.
    return jnp.maximum(d2, 0.0)


# ----------------------------------------------------------------------------
# Kernel 1: SV-SV Gram matrix with bias, exact diagonal and ridge term fused.
#   out[i, j] = exp(-||(w[:,i]+BIAS) * (sv[:,j] - sv[:,i])||)   (i != j)
#   out[i, i] = 1.0 + lamda                                      (ele2 diagonal)
# ----------------------------------------------------------------------------
def _sv_gram_body(w_ref, svi_ref, svj_ref, out_ref, *, lamda):
    w = w_ref[...] + BIAS                        # fused bias (no HBM round-trip)
    lhs = _sqdist_lhs(w, svi_ref[...])
    rhs = _sqdist_rhs(svj_ref[...])
    d2 = _sqdist_from_parts(lhs, rhs)
    k = jnp.exp(-jnp.sqrt(d2))                   # EUP-bound epilogue, keep f32

    i = pl.program_id(0)
    j = pl.program_id(1)

    # Diagonal tiles: exact self-distance (exp(0)=1) + ridge term, emitted
    # directly so the wrapper does no O(n^2) post-processing.
    @pl.when(i == j)
    def _():
        rows = lax.broadcasted_iota(jnp.int32, k.shape, 0)
        cols = lax.broadcasted_iota(jnp.int32, k.shape, 1)
        out_ref[...] = jnp.where(rows == cols, jnp.float32(1.0 + lamda), k)

    @pl.when(i != j)
    def _():
        out_ref[...] = k


def sv_gram(weight_p, x_sv_p, ti, lamda):
    m_pad, n_pad = x_sv_p.shape
    cost = pl.CostEstimate(
        flops=2 * 3 * m_pad * n_pad * n_pad,
        transcendentals=2 * n_pad * n_pad,
        bytes_accessed=4 * (3 * m_pad * n_pad + n_pad * n_pad),
    )
    return pl.pallas_call(
        functools.partial(_sv_gram_body, lamda=float(lamda)),
        out_shape=jax.ShapeDtypeStruct((n_pad, n_pad), jnp.float32),
        grid_spec=pltpu.PrefetchScalarGridSpec(
            num_scalar_prefetch=0,
            grid=(n_pad // ti, n_pad // ti),
            in_specs=[
                pl.BlockSpec((m_pad, ti), lambda i, j: (0, i)),   # weight (center i)
                pl.BlockSpec((m_pad, ti), lambda i, j: (0, i)),   # SVs as centers
                pl.BlockSpec((m_pad, ti), lambda i, j: (0, j)),   # SVs as queries
            ],
            out_specs=pl.BlockSpec((ti, ti), lambda i, j: (i, j)),
        ),
        compiler_params=pltpu.CompilerParams(
            dimension_semantics=("parallel", "parallel"),
            vmem_limit_bytes=_VMEM_LIMIT),
        cost_estimate=cost,
    )(weight_p, x_sv_p, x_sv_p)


# ----------------------------------------------------------------------------
# Kernel 2: fused train-Gram + prediction.
#   y[j] = sum_i alpha[i] * exp(-||(relu(w[:,i])+BIAS) * (x[:,j] - sv[:,i])||)
# Grid = (j tiles, i tiles); i is the inner reduction axis accumulated into a
# VMEM scratch, so the (N, N_val) train kernel matrix never hits HBM.  The
# j-invariant rhs (x^2, -2x, 1 concat) is hoisted into VMEM at i == 0.
# ----------------------------------------------------------------------------
def _fused_predict_body(w_ref, sv_ref, x_ref, alpha_ref, out_ref,
                        rhs_ref, acc_ref):
    i = pl.program_id(1)

    @pl.when(i == 0)
    def _():
        rhs_ref[...] = _sqdist_rhs(x_ref[...])   # built once per j-tile
        acc_ref[...] = jnp.zeros_like(acc_ref)

    w = jnp.maximum(w_ref[...], 0.0) + BIAS      # fused relu + bias
    lhs = _sqdist_lhs(w, sv_ref[...])
    d2 = _sqdist_from_parts(lhs, rhs_ref[...])
    k_tile = jnp.exp(-jnp.sqrt(d2))              # (TI, TJ), stays in VMEM
    acc_ref[...] += jnp.dot(alpha_ref[...], k_tile,
                            preferred_element_type=jnp.float32)

    @pl.when(i == pl.num_programs(1) - 1)
    def _():
        out_ref[...] = acc_ref[...]


def fused_predict(weight_p, x_sv_p, x_train_p, alpha_p, ti, tj):
    m_pad, n_pad = x_sv_p.shape
    nv_pad = x_train_p.shape[1]
    cost = pl.CostEstimate(
        flops=2 * 3 * m_pad * n_pad * nv_pad + 2 * n_pad * nv_pad,
        transcendentals=2 * n_pad * nv_pad,
        bytes_accessed=4 * (2 * m_pad * n_pad + m_pad * nv_pad + n_pad + nv_pad),
    )
    return pl.pallas_call(
        _fused_predict_body,
        out_shape=jax.ShapeDtypeStruct((1, nv_pad), jnp.float32),
        grid_spec=pltpu.PrefetchScalarGridSpec(
            num_scalar_prefetch=0,
            grid=(nv_pad // tj, n_pad // ti),            # reduction axis last
            in_specs=[
                pl.BlockSpec((m_pad, ti), lambda j, i: (0, i)),   # weight
                pl.BlockSpec((m_pad, ti), lambda j, i: (0, i)),   # support vectors
                pl.BlockSpec((m_pad, tj), lambda j, i: (0, j)),   # query points
                pl.BlockSpec((1, ti), lambda j, i: (0, i)),       # alpha
            ],
            out_specs=pl.BlockSpec((1, tj), lambda j, i: (0, j)),
            scratch_shapes=[pltpu.VMEM((3 * m_pad, tj), jnp.float32),  # hoisted rhs
                            pltpu.VMEM((1, tj), jnp.float32)],         # accumulator
        ),
        compiler_params=pltpu.CompilerParams(
            dimension_semantics=("parallel", "arbitrary"),
            vmem_limit_bytes=_VMEM_LIMIT),
        cost_estimate=cost,
    )(weight_p, x_sv_p, x_train_p, alpha_p)


# ----------------------------------------------------------------------------
# LABRBF forward (glue in plain JAX, hot paths in Pallas)
# ----------------------------------------------------------------------------
@functools.partial(jax.jit, static_argnames=("lamda", "tile_cap"))
def labrbf_forward(x_train, x_sv, y_sv, weight, lamda=LAMDA, tile_cap=512):
    x_train = x_train.astype(jnp.float32)
    x_sv = x_sv.astype(jnp.float32)
    y_sv = y_sv.astype(jnp.float32)
    weight = weight.astype(jnp.float32)

    m, n = x_sv.shape
    n_val = x_train.shape[1]
    assert x_train.shape[0] == m

    beta = jnp.mean(y_sv)

    # ---- padding / tiling ---------------------------------------------------
    # Pad point axes to multiples of 128 only (not of the tile); tiles are then
    # chosen to divide the padded extent, so no EUP/HBM work is wasted on
    # tile-granular padding for awkward N.
    m_pad = _round_up(m, 8)                      # f32 sublane multiple
    n_pad = _round_up(n, 128)
    nv_pad = _round_up(n_val, 128)
    ti = _pick_tile(n_pad, tile_cap)
    tj = _pick_tile(nv_pad, tile_cap)

    # Zero padding is exact: padded feature rows give diff == 0, and padded SV
    # columns are killed by zero-padded alpha below / sliced off.  (Padded
    # columns MUST stay exactly zero-filled so the kernel values stay finite.)
    x_sv_p = jnp.pad(x_sv, ((0, m_pad - m), (0, n_pad - n)))
    weight_p = jnp.pad(weight, ((0, m_pad - m), (0, n_pad - n)))
    x_train_p = jnp.pad(x_train, ((0, m_pad - m), (0, nv_pad - n_val)))

    # ---- support-vector Gram (ridge + exact diagonal fused in-kernel) -------
    ele2 = sv_gram(weight_p, x_sv_p, ti, lamda)[:n, :n]

    ele1 = y_sv.reshape(1, n) - beta
    # alpha = ele1 @ inv(ele2), computed as an LU solve (fewer flops, better
    # conditioned than an explicit inverse).  ele2 is NOT symmetric (per-SV
    # RBF widths), so a Cholesky / positive-definite solve does not apply.
    # TODO(synk): torch builds lamda*eye in float64; we stay in float32.  Dense
    # NxN solve has no clean Pallas equivalent; done with jnp.linalg.solve.
    alpha = jnp.linalg.solve(ele2.T, ele1.reshape(n, 1)).reshape(1, n)
    alpha_p = jnp.pad(alpha, ((0, 0), (0, n_pad - n)))

    # ---- fused train-Gram + prediction (train kernel never hits HBM) --------
    y_pad = fused_predict(weight_p, x_sv_p, x_train_p, alpha_p, ti, tj)
    return y_pad[:, :n_val] + beta


# ----------------------------------------------------------------------------
# Pure-JAX reference (direct, non-expanded math; mirrors the torch module)
# ----------------------------------------------------------------------------
def labrbf_reference(x_train, x_sv, y_sv, weight, lamda=LAMDA):
    n = x_sv.shape[1]
    beta = jnp.mean(y_sv)

    w_sv = weight + BIAS
    diff_sv = x_sv[:, None, :] - x_sv[:, :, None]        # [m,i,j] = sv[m,j]-sv[m,i]
    k_sv = jnp.exp(-jnp.linalg.norm(w_sv[:, :, None] * diff_sv, axis=0))

    w_tr = jnp.maximum(weight, 0.0) + BIAS
    diff_tr = x_train[:, None, :] - x_sv[:, :, None]     # [m,i,j] = x[m,j]-sv[m,i]
    k_tr = jnp.exp(-jnp.linalg.norm(w_tr[:, :, None] * diff_tr, axis=0))

    ele1 = y_sv.reshape(1, n) - beta
    ele2 = k_sv + lamda * jnp.eye(n, dtype=jnp.float32)
    alpha = ele1 @ jnp.linalg.inv(ele2)
    return alpha @ k_tr + beta


if __name__ == "__main__":
    def run_case(m, n, n_val, wmin, wmax, key, rtol=2e-4, atol=2e-4):
        k1, k2, k3, k4 = jax.random.split(key, 4)
        x_sv = jax.random.normal(k1, (m, n), jnp.float32)
        y_sv = jax.random.normal(k2, (n,), jnp.float32)
        weight_ini = jax.random.uniform(k3, (m, n), jnp.float32,
                                        minval=wmin, maxval=wmax)
        x_train = jax.random.normal(k4, (m, n_val), jnp.float32)

        y_pred = labrbf_forward(x_train, x_sv, y_sv, weight_ini)
        y_pred = jax.block_until_ready(y_pred)
        assert y_pred.shape == (1, n_val) and y_pred.dtype == jnp.float32

        y_ref = labrbf_reference(x_train, x_sv, y_sv, weight_ini)
        np.testing.assert_allclose(np.asarray(y_pred), np.asarray(y_ref),
                                   rtol=rtol, atol=atol)

    key = jax.random.PRNGKey(0)
    k_a, k_b, k_c = jax.random.split(key, 3)

    # Tiny shapes matching the module example (single-tile grid).
    run_case(m=4, n=8, n_val=16, wmin=0.1, wmax=1.0, key=k_a)
    # Moderate shapes exercising multi-tile grids, the fused i-reduction,
    # column padding, and the relu branch (some negative weights).
    run_case(m=8, n=200, n_val=300, wmin=-0.5, wmax=2.5, key=k_b)
    # Awkward sizes exercising 128-granular padding, a larger j tile, >=2
    # parallel grid steps per axis and the hoisted rhs scratch.  Slightly
    # looser tolerance for f32 solve-vs-explicit-inverse accumulation at
    # larger N.
    run_case(m=8, n=384, n_val=1000, wmin=0.1, wmax=1.0, key=k_c,
             rtol=5e-4, atol=5e-4)

    print("KERNEL_OK")
</pallas_src>

<mosaic_0001>
module attributes {stable_mosaic.version = 11 : i64} {
  func.func @_sv_gram_body(%arg0: i32, %arg1: i32, %arg2: memref<8x128xf32, #tpu.memory_space<vmem>>, %arg3: memref<8x128xf32, #tpu.memory_space<vmem>>, %arg4: memref<8x128xf32, #tpu.memory_space<vmem>>, %arg5: memref<128x128xf32, #tpu.memory_space<vmem>>) attributes {dimension_semantics = [#tpu.dimension_semantics<parallel>, #tpu.dimension_semantics<parallel>], iteration_bounds = array<i64: 1, 1>, scalar_prefetch = 0 : i64, scratch_operands = 0 : i64, tpu.core_type = #tpu.core_type<tc>, window_params = [{transform_indices = @transform_0, window_bounds = array<i64: 8, 128>}, {transform_indices = @transform_1, window_bounds = array<i64: 8, 128>}, {transform_indices = @transform_2, window_bounds = array<i64: 8, 128>}, {transform_indices = @transform_3, window_bounds = array<i64: 128, 128>}]} {
    %c0 = arith.constant 0 : index
    %c0_0 = arith.constant 0 : index
    %0 = vector.load %arg2[%c0, %c0_0] : memref<8x128xf32, #tpu.memory_space<vmem>>, vector<8x128xf32>
    %cst = arith.constant 9.99999974E-5 : f32
    %1 = vector.broadcast %cst : f32 to vector<8x128xf32>
    %2 = arith.addf %0, %1 : vector<8x128xf32>
    %c0_1 = arith.constant 0 : index
    %c0_2 = arith.constant 0 : index
    %3 = vector.load %arg3[%c0_1, %c0_2] : memref<8x128xf32, #tpu.memory_space<vmem>>, vector<8x128xf32>
    %4 = arith.mulf %2, %2 : vector<8x128xf32>
    %5 = arith.mulf %4, %3 : vector<8x128xf32>
    %6 = arith.mulf %3, %3 : vector<8x128xf32>
    %7 = arith.mulf %4, %6 : vector<8x128xf32>
    %8 = tpu.concatenate %4, %5, %7 in 0 : vector<8x128xf32>, vector<8x128xf32>, vector<8x128xf32> -> vector<24x128xf32>
    %c0_3 = arith.constant 0 : index
    %c0_4 = arith.constant 0 : index
    %9 = vector.load %arg4[%c0_3, %c0_4] : memref<8x128xf32, #tpu.memory_space<vmem>>, vector<8x128xf32>
    %10 = arith.mulf %9, %9 : vector<8x128xf32>
    %cst_5 = arith.constant -2.000000e+00 : f32
    %11 = vector.broadcast %cst_5 : f32 to vector<8x128xf32>
    %12 = arith.mulf %11, %9 : vector<8x128xf32>
    %cst_6 = arith.constant 1.000000e+00 : f32
    %13 = vector.broadcast %cst_6 : f32 to vector<8x128xf32>
    %14 = tpu.concatenate %10, %12, %13 in 0 : vector<8x128xf32>, vector<8x128xf32>, vector<8x128xf32> -> vector<24x128xf32>
    %cst_7 = arith.constant dense<0.000000e+00> : vector<128x128xf32>
    %15 = tpu.matmul %8, %14, %cst_7 {dimension_numbers = #tpu.dot_dimension_numbers<[0], [0], [1], [1], [0, 1, 1, 1], [], []>} : vector<24x128xf32>, vector<24x128xf32>, vector<128x128xf32> -> vector<128x128xf32>
    %cst_8 = arith.constant 0.000000e+00 : f32
    %16 = vector.broadcast %cst_8 : f32 to vector<128x128xf32>
    %17 = arith.maximumf %15, %16 : vector<128x128xf32>
    %18 = math.sqrt %17 : vector<128x128xf32>
    %cst_9 = arith.constant 0.000000e+00 : f32
    %19 = vector.broadcast %cst_9 : f32 to vector<128x128xf32>
    %20 = arith.subf %19, %18 : vector<128x128xf32>
    %21 = math.exp %20 : vector<128x128xf32>
    %22 = arith.cmpi eq, %arg0, %arg1 : i32
    %23 = arith.extui %22 : i1 to i32
    %c0_i32 = arith.constant 0 : i32
    %24 = arith.cmpi ne, %23, %c0_i32 : i32
    scf.if %24 {
      %28 = tpu.iota {dimensions = array<i32: 0>} : vector<128x128xi32>
      %29 = tpu.iota {dimensions = array<i32: 1>} : vector<128x128xi32>
      %30 = arith.cmpi eq, %28, %29 : vector<128x128xi32>
      %cst_11 = arith.constant 1.001000e+00 : f32
      %31 = vector.broadcast %cst_11 : f32 to vector<128x128xf32>
      %32 = arith.select %30, %31, %21 : vector<128x128xi1>, vector<128x128xf32>
      %c0_12 = arith.constant 0 : index
      %c0_13 = arith.constant 0 : index
      %33 = vector.load %arg5[%c0_12, %c0_13] : memref<128x128xf32, #tpu.memory_space<vmem>>, vector<128x128xf32>
      tpu.vector_store %arg5[%c0_12, %c0_13], %32 {strides = array<i32>} : memref<128x128xf32, #tpu.memory_space<vmem>>, vector<128x128xf32>,
    } else {
    }
    %25 = arith.cmpi ne, %arg0, %arg1 : i32
    %26 = arith.extui %25 : i1 to i32
    %c0_i32_10 = arith.constant 0 : i32
    %27 = arith.cmpi ne, %26, %c0_i32_10 : i32
    scf.if %27 {
      %c0_11 = arith.constant 0 : index
      %c0_12 = arith.constant 0 : index
      %28 = vector.load %arg5[%c0_11, %c0_12] : memref<128x128xf32, #tpu.memory_space<vmem>>, vector<128x128xf32>
      tpu.vector_store %arg5[%c0_11, %c0_12], %21 {strides = array<i32>} : memref<128x128xf32, #tpu.memory_space<vmem>>, vector<128x128xf32>,
    } else {
    }
    return
  }
  func.func @transform_0(%arg0: i32, %arg1: i32) -> (i32, i32) {
    %c0_i32 = arith.constant 0 : i32
    %c0_i32_0 = arith.constant 0 : i32
    return %c0_i32, %arg0 : i32, i32
  }
  func.func @transform_1(%arg0: i32, %arg1: i32) -> (i32, i32) {
    %c0_i32 = arith.constant 0 : i32
    %c0_i32_0 = arith.constant 0 : i32
    return %c0_i32, %arg0 : i32, i32
  }
  func.func @transform_2(%arg0: i32, %arg1: i32) -> (i32, i32) {
    %c0_i32 = arith.constant 0 : i32
    %c0_i32_0 = arith.constant 0 : i32
    return %c0_i32, %arg1 : i32, i32
  }
  func.func @transform_3(%arg0: i32, %arg1: i32) -> (i32, i32) {
    %c0_i32 = arith.constant 0 : i32
    return %arg0, %arg1 : i32, i32
  }
}

module attributes {stable_mosaic.version = 11 : i64} {
  func.func @_fused_predict_body(%arg0: i32, %arg1: i32, %arg2: memref<8x128xf32, #tpu.memory_space<vmem>>, %arg3: memref<8x128xf32, #tpu.memory_space<vmem>>, %arg4: memref<8x128xf32, #tpu.memory_space<vmem>>, %arg5: memref<1x128xf32, #tpu.memory_space<vmem>>, %arg6: memref<1x128xf32, #tpu.memory_space<vmem>>, %arg7: memref<24x128xf32, #tpu.memory_space<vmem>>, %arg8: memref<1x128xf32, #tpu.memory_space<vmem>>) attributes {dimension_semantics = [#tpu.dimension_semantics<parallel>, #tpu.dimension_semantics<arbitrary>], iteration_bounds = array<i64: 1, 1>, scalar_prefetch = 0 : i64, scratch_operands = 2 : i64, tpu.core_type = #tpu.core_type<tc>, window_params = [{transform_indices = @transform_0, window_bounds = array<i64: 8, 128>}, {transform_indices = @transform_1, window_bounds = array<i64: 8, 128>}, {transform_indices = @transform_2, window_bounds = array<i64: 8, 128>}, {transform_indices = @transform_3, window_bounds = array<i64: 1, 128>}, {transform_indices = @transform_4, window_bounds = array<i64: 1, 128>}]} {
    %c0_i32 = arith.constant 0 : i32
    %0 = arith.cmpi eq, %arg1, %c0_i32 : i32
    %1 = arith.extui %0 : i1 to i32
    %c0_i32_0 = arith.constant 0 : i32
    %2 = arith.cmpi ne, %1, %c0_i32_0 : i32
    scf.if %2 {
      %c0_19 = arith.constant 0 : index
      %c0_20 = arith.constant 0 : index
      %30 = vector.load %arg4[%c0_19, %c0_20] : memref<8x128xf32, #tpu.memory_space<vmem>>, vector<8x128xf32>
      %31 = arith.mulf %30, %30 : vector<8x128xf32>
      %cst_21 = arith.constant -2.000000e+00 : f32
      %32 = vector.broadcast %cst_21 : f32 to vector<8x128xf32>
      %33 = arith.mulf %32, %30 : vector<8x128xf32>
      %cst_22 = arith.constant 1.000000e+00 : f32
      %34 = vector.broadcast %cst_22 : f32 to vector<8x128xf32>
      %35 = tpu.concatenate %31, %33, %34 in 0 : vector<8x128xf32>, vector<8x128xf32>, vector<8x128xf32> -> vector<24x128xf32>
      %c0_23 = arith.constant 0 : index
      %c0_24 = arith.constant 0 : index
      %36 = vector.load %arg7[%c0_23, %c0_24] : memref<24x128xf32, #tpu.memory_space<vmem>>, vector<24x128xf32>
      tpu.vector_store %arg7[%c0_23, %c0_24], %35 {strides = array<i32>} : memref<24x128xf32, #tpu.memory_space<vmem>>, vector<24x128xf32>,
      %cst_25 = arith.constant 0.000000e+00 : f32
      %37 = vector.broadcast %cst_25 : f32 to vector<1x128xf32>
      %c0_26 = arith.constant 0 : index
      %c0_27 = arith.constant 0 : index
      %38 = vector.load %arg8[%c0_26, %c0_27] : memref<1x128xf32, #tpu.memory_space<vmem>>, vector<1x128xf32>
      tpu.vector_store %arg8[%c0_26, %c0_27], %37 {strides = array<i32>} : memref<1x128xf32, #tpu.memory_space<vmem>>, vector<1x128xf32>,
    } else {
    }
    %c0 = arith.constant 0 : index
    %c0_1 = arith.constant 0 : index
    %3 = vector.load %arg2[%c0, %c0_1] : memref<8x128xf32, #tpu.memory_space<vmem>>, vector<8x128xf32>
    %cst = arith.constant 0.000000e+00 : f32
    %4 = vector.broadcast %cst : f32 to vector<8x128xf32>
    %5 = arith.maximumf %3, %4 : vector<8x128xf32>
    %cst_2 = arith.constant 9.99999974E-5 : f32
    %6 = vector.broadcast %cst_2 : f32 to vector<8x128xf32>
    %7 = arith.addf %5, %6 : vector<8x128xf32>
    %c0_3 = arith.constant 0 : index
    %c0_4 = arith.constant 0 : index
    %8 = vector.load %arg3[%c0_3, %c0_4] : memref<8x128xf32, #tpu.memory_space<vmem>>, vector<8x128xf32>
    %9 = arith.mulf %7, %7 : vector<8x128xf32>
    %10 = arith.mulf %9, %8 : vector<8x128xf32>
    %11 = arith.mulf %8, %8 : vector<8x128xf32>
    %12 = arith.mulf %9, %11 : vector<8x128xf32>
    %13 = tpu.concatenate %9, %10, %12 in 0 : vector<8x128xf32>, vector<8x128xf32>, vector<8x128xf32> -> vector<24x128xf32>
    %c0_5 = arith.constant 0 : index
    %c0_6 = arith.constant 0 : index
    %14 = vector.load %arg7[%c0_5, %c0_6] : memref<24x128xf32, #tpu.memory_space<vmem>>, vector<24x128xf32>
    %cst_7 = arith.constant dense<0.000000e+00> : vector<128x128xf32>
    %15 = tpu.matmul %13, %14, %cst_7 {dimension_numbers = #tpu.dot_dimension_numbers<[0], [0], [1], [1], [0, 1, 1, 1], [], []>} : vector<24x128xf32>, vector<24x128xf32>, vector<128x128xf32> -> vector<128x128xf32>
    %cst_8 = arith.constant 0.000000e+00 : f32
    %16 = vector.broadcast %cst_8 : f32 to vector<128x128xf32>
    %17 = arith.maximumf %15, %16 : vector<128x128xf32>
    %18 = math.sqrt %17 : vector<128x128xf32>
    %cst_9 = arith.constant 0.000000e+00 : f32
    %19 = vector.broadcast %cst_9 : f32 to vector<128x128xf32>
    %20 = arith.subf %19, %18 : vector<128x128xf32>
    %21 = math.exp %20 : vector<128x128xf32>
    %c0_10 = arith.constant 0 : index
    %c0_11 = arith.constant 0 : index
    %22 = vector.load %arg8[%c0_10, %c0_11] : memref<1x128xf32, #tpu.memory_space<vmem>>, vector<1x128xf32>
    %c0_12 = arith.constant 0 : index
    %c0_13 = arith.constant 0 : index
    %23 = vector.load %arg5[%c0_12, %c0_13] : memref<1x128xf32, #tpu.memory_space<vmem>>, vector<1x128xf32>
    %cst_14 = arith.constant dense<0.000000e+00> : vector<1x128xf32>
    %24 = tpu.matmul %23, %21, %cst_14 {dimension_numbers = #tpu.dot_dimension_numbers<[1], [0], [0], [1], [0, 0, 1, 1], [], []>} : vector<1x128xf32>, vector<128x128xf32>, vector<1x128xf32> -> vector<1x128xf32>
    %25 = arith.addf %22, %24 : vector<1x128xf32>
    %c0_15 = arith.constant 0 : index
    %c0_16 = arith.constant 0 : index
    %26 = vector.load %arg8[%c0_15, %c0_16] : memref<1x128xf32, #tpu.memory_space<vmem>>, vector<1x128xf32>
    tpu.vector_store %arg8[%c0_15, %c0_16], %25 {strides = array<i32>} : memref<1x128xf32, #tpu.memory_space<vmem>>, vector<1x128xf32>,
    %c0_i32_17 = arith.constant 0 : i32
    %27 = arith.cmpi eq, %arg1, %c0_i32_17 : i32
    %28 = arith.extui %27 : i1 to i32
    %c0_i32_18 = arith.constant 0 : i32
    %29 = arith.cmpi ne, %28, %c0_i32_18 : i32
    scf.if %29 {
      %c0_19 = arith.constant 0 : index
      %c0_20 = arith.constant 0 : index
      %30 = vector.load %arg8[%c0_19, %c0_20] : memref<1x128xf32, #tpu.memory_space<vmem>>, vector<1x128xf32>
      %c0_21 = arith.constant 0 : index
      %c0_22 = arith.constant 0 : index
      %31 = vector.load %arg6[%c0_21, %c0_22] : memref<1x128xf32, #tpu.memory_space<vmem>>, vector<1x128xf32>
      tpu.vector_store %arg6[%c0_21, %c0_22], %30 {strides = array<i32>} : memref<1x128xf32, #tpu.memory_space<vmem>>, vector<1x128xf32>,
    } else {
    }
    return
  }
  func.func @transform_0(%arg0: i32, %arg1: i32) -> (i32, i32) {
    %c0_i32 = arith.constant 0 : i32
    %c0_i32_0 = arith.constant 0 : i32
    return %c0_i32, %arg1 : i32, i32
  }
  func.func @transform_1(%arg0: i32, %arg1: i32) -> (i32, i32) {
    %c0_i32 = arith.constant 0 : i32
    %c0_i32_0 = arith.constant 0 : i32
    return %c0_i32, %arg1 : i32, i32
  }
  func.func @transform_2(%arg0: i32, %arg1: i32) -> (i32, i32) {
    %c0_i32 = arith.constant 0 : i32
    %c0_i32_0 = arith.constant 0 : i32
    return %c0_i32, %arg0 : i32, i32
  }
  func.func @transform_3(%arg0: i32, %arg1: i32) -> (i32, i32) {
    %c0_i32 = arith.constant 0 : i32
    %c0_i32_0 = arith.constant 0 : i32
    return %c0_i32, %arg1 : i32, i32
  }
  func.func @transform_4(%arg0: i32, %arg1: i32) -> (i32, i32) {
    %c0_i32 = arith.constant 0 : i32
    %c0_i32_0 = arith.constant 0 : i32
    return %c0_i32, %arg0 : i32, i32
  }
}

</mosaic_0001>

<llo_original>
// kernel: custom-call.8
$region0: #{custom-call.8}
  %s0 = inlined_call_operand.vmem [shape: f32[8,8], index: 0, kind: input, shape index: {}]
  %s1 = inlined_call_operand.vmem [shape: f32[8,8], index: 1, kind: output, shape index: {0}]
  %s2 = inlined_call_operand.hbm [shape: s32[8], index: 2, kind: output, shape index: {1}]
  %s3 = inlined_call_operand.vmem [shape: s32[8], index: 3, kind: output, shape index: {2}]
  %4 = xla_tuple %s1, %s2, %s3
  $region1: #{custom-call.8} parent=0
    #allocation0 [shape = 'u8[4096]{0}', space=vmem, size = 0x1000, scoped, tag = 'operand span for operand 0']
    #allocation1 [shape = 'u8[4096]{0}', space=vmem, size = 0x1000, scoped, tag = 'operand span for operand 1']
    #allocation2 [shape = 'u8[4096]{0}', space=vmem, size = 0x1000, scoped, tag = 'operand span for operand 2']
    #allocation3 [shape = 'u8[512]{0}', space=vmem, size = 0x400, scoped, tag = 'packed  for operand 2']
    #allocation4 [shape = 's32[1]{0}', space=sflag, size = 0x4, scoped, tag = 'scoped memory for custom-call.8']
    #allocation5 [shape = 'u8[4096]{0}', space=vmem, size = 0x1000, scoped, tag = 'operand span for operand 3']
    #allocation6 [shape = 'u8[512]{0}', space=vmem, size = 0x400, scoped, tag = 'packed  for operand 3']
    #allocation7 [shape = 's32[8,128]{1,0}', space=vmem, size = 0x1000, scoped, tag = 'scratch for permutations']
    %5 = vsyncpa [#allocation4], 0
    // Predicated region
    $region2: #{custom-call.8} parent=1 // pred_check
      _
    $region3: #{custom-call.8} parent=1 // pred_check_branch
      %7 = sbr.rel (0) target = $region5
    $region4: #{custom-call.8} parent=1 // pred_region
      %p9 = scmp.gt.s32.totalorder 1, 0
      // Predicated region
      $region6: #{custom-call.8} parent=4 // pred_check
        %p10 = pneg %p9
      $region7: #{custom-call.8} parent=4 // pred_check_branch
        %12 = sbr.rel (%p10) target = $region9
      $region8: #{custom-call.8} parent=4 // pred_region
        %s13 = ssub.s32 1, 1
        %s14 = smul.u32 %s13, 8
        %s15 = scalar_lea.vmem %s0, %s14
        %v16 = vld [vmem:[%s0] sm:$0xff]
        // While loop
        $region10: #{custom-call.8} parent=8 // loop_pre_header
          _
        $region11: #{custom-call.8} parent=8 // loop_header
          %s17 = sphi %s0, %s39
          %s18 = sphi [#allocation0], %s40
          %v19 = vphi %v16, %v41
          %s20 = ssub.s32 %s15, 64
          %p21 = scmp.gt.s32.totalorder %s17, %s20
        $region12: #{custom-call.8} parent=8 // loop_header_branch
          %23 = sbr.rel (%p21) target = $region16
        $region13: #{custom-call.8} parent=8 // loop_body
          %24 = vst [vmem:[%s18] sm:$0xff] %v19
          %v25 = vld [vmem:[%s17 + $0x8] sm:$0xff]
          %26 = vst [vmem:[%s18 + $0x8] sm:$0xff] %v25
          %v27 = vld [vmem:[%s17 + $0x10] sm:$0xff]
          %28 = vst [vmem:[%s18 + $0x10] sm:$0xff] %v27
          %v29 = vld [vmem:[%s17 + $0x18] sm:$0xff]
          %30 = vst [vmem:[%s18 + $0x18] sm:$0xff] %v29
          %v31 = vld [vmem:[%s17 + $0x20] sm:$0xff]
          %32 = vst [vmem:[%s18 + $0x20] sm:$0xff] %v31
          %v33 = vld [vmem:[%s17 + $0x28] sm:$0xff]
          %34 = vst [vmem:[%s18 + $0x28] sm:$0xff] %v33
          %v35 = vld [vmem:[%s17 + $0x30] sm:$0xff]
          %36 = vst [vmem:[%s18 + $0x30] sm:$0xff] %v35
          %v37 = vld [vmem:[%s17 + $0x38] sm:$0xff]
          %38 = vst [vmem:[%s18 + $0x38] sm:$0xff] %v37
        $region14: #{custom-call.8} parent=8 // loop_footer
          %s39 = scalar_lea.vmem %s17, 64
          %s40 = scalar_lea.vmem %s18, 64
          %v41 = vld [vmem:[%s17 + $0x40] sm:$0xff]
        $region15: #{custom-call.8} parent=8 // loop_footer_branch
          %42 = sbr.rel target = $region11
        $region16: #{custom-call.8} parent=8 // loop_exit
          _
        // While loop
        $region17: #{custom-call.8} parent=8 // loop_pre_header
          _
        $region18: #{custom-call.8} parent=8 // loop_header
          %s43 = sphi %s17, %s51
          %s44 = sphi %s18, %s52
          %v45 = vphi %v19, %v45
          %p46 = scmp.gt.s32.totalorder %s43, %s15
        $region19: #{custom-call.8} parent=8 // loop_header_branch
          %48 = sbr.rel (%p46) target = $region23
        $region20: #{custom-call.8} parent=8 // loop_body
          %v49 = vld [vmem:[%s43] sm:$0xff]
          %50 = vst [vmem:[%s44] sm:$0xff] %v49
        $region21: #{custom-call.8} parent=8 // loop_footer
          %s51 = scalar_lea.vmem %s43, 8
          %s52 = scalar_lea.vmem %s44, 8
        $region22: #{custom-call.8} parent=8 // loop_footer_branch
          %53 = sbr.rel target = $region18
        $region23: #{custom-call.8} parent=8 // loop_exit
          _
      $region9: #{custom-call.8} parent=4 // pred_fallthru
        _
      %s55 = ssub.s32 1, 1
      %s56 = smul.u32 1, 8
      %s57 = scalar_lea.vmem [#allocation0], %s56
      %s58 = smul.u32 1, 8
      %s59 = scalar_lea.vmem %s0, %s58
      %v60 = vld [vmem:[%s59] sm:%s55]
      %61 = vst [vmem:[%s57] sm:%s55] %v60
    $region5: #{custom-call.8} parent=1 // pred_fallthru
      _
    %v62 = vld [vmem:[#allocation0] sm:$0xff]
    %63 = vst [vmem:[#allocation1] sm:$0xff] %v62
    %64 = vst [vmem:[#allocation2] sm:$0x1] 0
    %v65 = vlaneseq
    %v66 = vshrl.u32 %v65, 7
    %v67 = vmov %v66
    %69 = vst [vmem:[#allocation7] sm:$0xff] %v67
    loop: start=0, step=1, limit=8
    $region25: #{custom-call.8} parent=1 // loop_pre_header
      _
    $region26: #{custom-call.8} parent=1 // loop_header
      %s71 = sphi 0, %s75
      %p72 = scmp.ge.s32.totalorder %s71, 8
    $region27: #{custom-call.8} parent=1 // loop_header_branch
      %74 = sbr.rel (%p72) target = $region31
    $region28: #{custom-call.8} parent=1 // loop_body
      %v76 = vstv %s71
      %v77 = vlaneseq
      %v78 = vshrl.u32 %v77, 7
      %v79 = vmov %v78
      %v80 = vld [vmem:[#allocation1] sm:$0xff]
      %v81 = vand.u32 2147483647, %v80
      %v83 = vstv %s71
      %vm84 = vcmp.ge.s32.totalorder %v79, %v83
      %vm85 = vcmp.lt.s32.totalorder %v79, 8
      %vm86 = vmand %vm84, %vm85
      %vm87 = vcmp.lt.f32.partialorder -inf, %v81
      %vm88 = vmand %vm86, %vm87
      %v89 = vsel %vm88, %v79, %v76
      %v90 = vsel %vm88, %v81, -inf
      %v91 = vrot.slane %v90, 1
      %v92 = vrot.slane %v89, 1
      %vm93 = vcmp.ge.f32.partialorder %v91, %v90
      %v94 = vsel %vm93, %v91, %v90
      %v95 = vsel %vm93, %v92, %v89
      %v96 = vrot.slane %v91, 1
      %v97 = vrot.slane %v92, 1
      %vm98 = vcmp.ge.f32.partialorder %v96, %v94
      %v99 = vsel %vm98, %v96, %v94
      %v100 = vsel %vm98, %v97, %v95
      %v101 = vrot.slane %v96, 1
      %v102 = vrot.slane %v97, 1
      %vm103 = vcmp.ge.f32.partialorder %v101, %v99
      %v104 = vsel %vm103, %v101, %v99
      %v105 = vsel %vm103, %v102, %v100
      %v106 = vrot.slane %v101, 1
      %v107 = vrot.slane %v102, 1
      %vm108 = vcmp.ge.f32.partialorder %v106, %v104
      %v109 = vsel %vm108, %v106, %v104
      %v110 = vsel %vm108, %v107, %v105
      %v111 = vrot.slane %v106, 1
      %v112 = vrot.slane %v107, 1
      %vm113 = vcmp.ge.f32.partialorder %v111, %v109
      %v114 = vsel %vm113, %v111, %v109
      %v115 = vsel %vm113, %v112, %v110
      %v116 = vrot.slane %v111, 1
      %v117 = vrot.slane %v112, 1
      %vm118 = vcmp.ge.f32.partialorder %v116, %v114
      %v119 = vsel %vm118, %v116, %v114
      %v120 = vsel %vm118, %v117, %v115
      %v121 = vrot.slane %v116, 1
      %v122 = vrot.slane %v117, 1
      %vm123 = vcmp.ge.f32.partialorder %v121, %v119
      %v124 = vsel %vm123, %v121, %v119
      %v125 = vsel %vm123, %v122, %v120
      %s126 = ssub.s32 128, %s71
      %127 = vrot.lane.b32.xlu0 %v125, %s126
      %v128 = vpop.permute.xlu0 %127
      %s129 = vtos %v128
      %v130 = vstv %s71
      %v131 = vlaneseq
      %v132 = vand.u32 %v131, 127
      %vm133 = vcmp.eq.s32.totalorder %v132, %v130
      %v134 = vstv %s129
      %v135 = vld [vmem:[#allocation2] ss:$0 sm:$0xff]
      %v136 = vsel %vm133, %v134, %v135
      %137 = vst [vmem:[#allocation2] sm:$0x1] %v136
      %s138 = scalar_lea.vmem [#allocation1], %s71
      %s139 = scalar_lea.vmem [#allocation1], %s129
      %v140 = vld [vmem:[%s138] ss:$0 sm:$0xff]
      %v141 = vld [vmem:[%s139] ss:$0 sm:$0xff]
      %142 = vst [vmem:[%s139] sm:$0x1] %v140
      %143 = vst [vmem:[%s138] sm:$0x1] %v141
      %s144 = scalar_lea.vmem [#allocation7], %s71
      %s145 = scalar_lea.vmem [#allocation7], %s129
      %v146 = vld [vmem:[%s144] ss:$0 sm:$0xff]
      %v147 = vld [vmem:[%s145] ss:$0 sm:$0xff]
      %148 = vst [vmem:[%s145] sm:$0x1] %v146
      %149 = vst [vmem:[%s144] sm:$0x1] %v147
      %vm150 = vcmp.ne.f32.partialorder %v141, 0.0
      %vm151 = vmand %vm133, %vm150
      %v152 = vsel %vm151, %v141, 1.0
      %v153 = vlaneseq
      %v154 = vand.u32 %v153, 127
      %v155 = vstv %s71
      %vm156 = vcmp.gt.s32.totalorder %v154, %v155
      %v157 = vsel %vm156, %v141, 0.0
      %v158 = vlaneseq
      %v159 = vshrl.u32 %v158, 7
      %v160 = vmov %v159
      %v161 = vld [vmem:[#allocation1] sm:$0xff]
      %v163 = vstv %s71
      %vm164 = vcmp.gt.s32.totalorder %v160, %v163
      %v165 = vsel %vm164, %v152, 1.0
      %v166 = vrcp.pop %v165
      %v167 = vmul.f32 %v165, %v166
      %v168 = vsub.f32 1.0, %v167
      %v169 = vmul.f32 %v166, %v168
      %v170 = vadd.f32 %v166, %v169
      %vm171 = vweird.f32 %v165
      %vm172 = vweird.f32 %v166
      %vm173 = vmor %vm171, %vm172
      %v174 = vsel %vm173, %v166, %v170
      %v175 = vand.u32 2147483647, %v165
      %vm176 = vcmp.eq.f32.partialorder %v175, 8.507059e+37
      %v177 = vand.u32 %v165, 2147483648
      %v178 = vor.u32 1.1754944e-38, %v177
      %v179 = vsel %vm176, %v178, %v174
      %v180 = vmul.f32 %v161, %v179
      %vm181 = vmand %vm164, %vm133
      %v182 = vsel %vm181, %v180, 0.0
      %183 = vadd.xlane.f32.xlu0 %v182
      %v184 = vpop.xlane.xlu0 %183
      %v185 = vmul.f32 %v184, %v157
      %v186 = vsub.f32 %v180, %v185
      %187 = vst [vmem:[#allocation1] sm:$0xff] %v186
    $region29: #{custom-call.8} parent=1 // loop_footer
      %s75 = sadd.s32 1, %s71
    $region30: #{custom-call.8} parent=1 // loop_footer_branch
      %70 = sbr.rel target = $region26
    $region31: #{custom-call.8} parent=1 // loop_exit
      _
    %v188 = vld [vmem:[#allocation7] sm:$0xff]
    %s189 = scalar_lea.vmem [#allocation7], 8
    %s190 = scalar_lea.vmem [#allocation7], 16
    %s191 = scalar_lea.vmem [#allocation7], 24
    %s192 = scalar_lea.vmem [#allocation7], 32
    %s193 = scalar_lea.vmem [#allocation7], 40
    %s194 = scalar_lea.vmem [#allocation7], 48
    %s195 = scalar_lea.vmem [#allocation7], 56
    %s196 = scalar_lea.vmem [#allocation7], 64
    %s197 = scalar_lea.vmem [#allocation7], 72
    %s198 = scalar_lea.vmem [#allocation7], 80
    %s199 = scalar_lea.vmem [#allocation7], 88
    %s200 = scalar_lea.vmem [#allocation7], 96
    %s201 = scalar_lea.vmem [#allocation7], 104
    %s202 = scalar_lea.vmem [#allocation7], 112
    %s203 = scalar_lea.vmem [#allocation7], 120
    %204 = vxpose.xlu0.b32.start [1/16] %v188, 128
    %205 = vxpose.xlu0.b32.cont [2/16] 0, 128
    %206 = vxpose.xlu0.b32.cont [3/16] 0, 128
    %207 = vxpose.xlu0.b32.cont [4/16] 0, 128
    %208 = vxpose.xlu0.b32.cont [5/16] 0, 128
    %209 = vxpose.xlu0.b32.cont [6/16] 0, 128
    %210 = vxpose.xlu0.b32.cont [7/16] 0, 128
    %211 = vxpose.xlu0.b32.cont [8/16] 0, 128
    %212 = vxpose.xlu0.b32.cont [9/16] 0, 128
    %213 = vxpose.xlu0.b32.cont [10/16] 0, 128
    %214 = vxpose.xlu0.b32.cont [11/16] 0, 128
    %215 = vxpose.xlu0.b32.cont [12/16] 0, 128
    %216 = vxpose.xlu0.b32.cont [13/16] 0, 128
    %217 = vxpose.xlu0.b32.cont [14/16] 0, 128
    %218 = vxpose.xlu0.b32.cont [15/16] 0, 128
    %219 = vxpose.xlu0.b32.end [16/16] 0, 128
    %v220 = vpop.trf.xlu0
    %v221 = vpop.trf.xlu0
    %v222 = vpop.trf.xlu0
    %v223 = vpop.trf.xlu0
    %v224 = vpop.trf.xlu0
    %v225 = vpop.trf.xlu0
    %v226 = vpop.trf.xlu0
    %v227 = vpop.trf.xlu0
    %v228 = vpop.trf.xlu0
    %v229 = vpop.trf.xlu0
    %v230 = vpop.trf.xlu0
    %v231 = vpop.trf.xlu0
    %v232 = vpop.trf.xlu0
    %v233 = vpop.trf.xlu0
    %v234 = vpop.trf.xlu0
    %v235 = vpop.trf.xlu0
    %236 = vst [vmem:[#allocation5] sm:$0x1] %v220
    %s238 = ssub.s32 2, 1
    %v239 = vld [vmem:[#allocation2] sm:%s238]
    %s241 = ssub.s32 2, 1
    %242 = vst [vmem:[#allocation3] sm:%s241] %v239
    %s244 = ssub.s32 2, 1
    %v245 = vld [vmem:[#allocation5] sm:%s244]
    %s247 = ssub.s32 2, 1
    %248 = vst [vmem:[#allocation6] sm:%s247] %v245
    // Predicated region
    $region32: #{custom-call.8} parent=1 // pred_check
      _
    $region33: #{custom-call.8} parent=1 // pred_check_branch
      %250 = sbr.rel (0) target = $region35
    $region34: #{custom-call.8} parent=1 // pred_region
      %p252 = scmp.gt.s32.totalorder 1, 0
      // Predicated region
      $region36: #{custom-call.8} parent=34 // pred_check
        %p253 = pneg %p252
      $region37: #{custom-call.8} parent=34 // pred_check_branch
        %255 = sbr.rel (%p253) target = $region39
      $region38: #{custom-call.8} parent=34 // pred_region
        %s256 = ssub.s32 1, 1
        %s257 = smul.u32 %s256, 8
        %s258 = scalar_lea.vmem [#allocation1], %s257
        %v259 = vld [vmem:[#allocation1] sm:$0xff]
        // While loop
        $region40: #{custom-call.8} parent=38 // loop_pre_header
          _
        $region41: #{custom-call.8} parent=38 // loop_header
          %s260 = sphi [#allocation1], %s282
          %s261 = sphi %s1, %s283
          %v262 = vphi %v259, %v284
          %s263 = ssub.s32 %s258, 64
          %p264 = scmp.gt.s32.totalorder %s260, %s263
        $region42: #{custom-call.8} parent=38 // loop_header_branch
          %266 = sbr.rel (%p264) target = $region46
        $region43: #{custom-call.8} parent=38 // loop_body
          %267 = vst [vmem:[%s261] sm:$0xff] %v262
          %v268 = vld [vmem:[%s260 + $0x8] sm:$0xff]
          %269 = vst [vmem:[%s261 + $0x8] sm:$0xff] %v268
          %v270 = vld [vmem:[%s260 + $0x10] sm:$0xff]
          %271 = vst [vmem:[%s261 + $0x10] sm:$0xff] %v270
          %v272 = vld [vmem:[%s260 + $0x18] sm:$0xff]
          %273 = vst [vmem:[%s261 + $0x18] sm:$0xff] %v272
          %v274 = vld [vmem:[%s260 + $0x20] sm:$0xff]
          %275 = vst [vmem:[%s261 + $0x20] sm:$0xff] %v274
          %v276 = vld [vmem:[%s260 + $0x28] sm:$0xff]
          %277 = vst [vmem:[%s261 + $0x28] sm:$0xff] %v276
          %v278 = vld [vmem:[%s260 + $0x30] sm:$0xff]
          %279 = vst [vmem:[%s261 + $0x30] sm:$0xff] %v278
          %v280 = vld [vmem:[%s260 + $0x38] sm:$0xff]
          %281 = vst [vmem:[%s261 + $0x38] sm:$0xff] %v280
        $region44: #{custom-call.8} parent=38 // loop_footer
          %s282 = scalar_lea.vmem %s260, 64
          %s283 = scalar_lea.vmem %s261, 64
          %v284 = vld [vmem:[%s260 + $0x40] sm:$0xff]
        $region45: #{custom-call.8} parent=38 // loop_footer_branch
          %285 = sbr.rel target = $region41
        $region46: #{custom-call.8} parent=38 // loop_exit
          _
        // While loop
        $region47: #{custom-call.8} parent=38 // loop_pre_header
          _
        $region48: #{custom-call.8} parent=38 // loop_header
          %s286 = sphi %s260, %s294
          %s287 = sphi %s261, %s295
          %v288 = vphi %v262, %v288
          %p289 = scmp.gt.s32.totalorder %s286, %s258
        $region49: #{custom-call.8} parent=38 // loop_header_branch
          %291 = sbr.rel (%p289) target = $region53
        $region50: #{custom-call.8} parent=38 // loop_body
          %v292 = vld [vmem:[%s286] sm:$0xff]
          %293 = vst [vmem:[%s287] sm:$0xff] %v292
        $region51: #{custom-call.8} parent=38 // loop_footer
          %s294 = scalar_lea.vmem %s286, 8
          %s295 = scalar_lea.vmem %s287, 8
        $region52: #{custom-call.8} parent=38 // loop_footer_branch
          %296 = sbr.rel target = $region48
        $region53: #{custom-call.8} parent=38 // loop_exit
          _
      $region39: #{custom-call.8} parent=34 // pred_fallthru
        _
      %s298 = ssub.s32 1, 1
      %s299 = smul.u32 1, 8
      %s300 = scalar_lea.vmem %s1, %s299
      %s301 = smul.u32 1, 8
      %s302 = scalar_lea.vmem [#allocation1], %s301
      %v303 = vld [vmem:[%s302] sm:%s298]
      %304 = vst [vmem:[%s300] sm:%s298] %v303
    $region35: #{custom-call.8} parent=1 // pred_fallthru
      _
    // Predicated region
    $region54: #{custom-call.8} parent=1 // pred_check
      _
    $region55: #{custom-call.8} parent=1 // pred_check_branch
      %306 = sbr.rel (0) target = $region57
    $region56: #{custom-call.8} parent=1 // pred_region
      %308 = vsyncadd [#allocation4], 0
      %s310 = sshll.u32 [#allocation3], 4
      %s311 = int_to_ptr.vmem [resolvable:$true] %s310
      %s312 = sshll.u32 %s2, 4
      %s313 = int_to_ptr.hbm [resolvable:$true] %s312
      %315 = dma.vmem_to_hbm [thread:$0]  %s311, 16, %s313, [#allocation4]
    $region57: #{custom-call.8} parent=1 // pred_fallthru
      _
    // Predicated region
    $region58: #{custom-call.8} parent=1 // pred_check
      _
    $region59: #{custom-call.8} parent=1 // pred_check_branch
      %317 = sbr.rel (0) target = $region61
    $region60: #{custom-call.8} parent=1 // pred_region
      // Predicated region
      $region62: #{custom-call.8} parent=60 // pred_check
        _
      $region63: #{custom-call.8} parent=60 // pred_check_branch
        %319 = sbr.rel (0) target = $region65
      $region64: #{custom-call.8} parent=60 // pred_region
        %p321 = scmp.gt.s32.totalorder 0, 0
        // Predicated region
        $region66: #{custom-call.8} parent=64 // pred_check
          %p322 = pneg %p321
        $region67: #{custom-call.8} parent=64 // pred_check_branch
          %324 = sbr.rel (%p322) target = $region69
        $region68: #{custom-call.8} parent=64 // pred_region
          %s325 = ssub.s32 0, 1
          %s326 = smul.u32 %s325, 8
          %s327 = scalar_lea.vmem [#allocation6], %s326
          %v328 = vld [vmem:[#allocation6] sm:$0xff]
          // While loop
          $region70: #{custom-call.8} parent=68 // loop_pre_header
            _
          $region71: #{custom-call.8} parent=68 // loop_header
            %s329 = sphi [#allocation6], %s351
            %s330 = sphi %s3, %s352
            %v331 = vphi %v328, %v353
            %s332 = ssub.s32 %s327, 64
            %p333 = scmp.gt.s32.totalorder %s329, %s332
          $region72: #{custom-call.8} parent=68 // loop_header_branch
            %335 = sbr.rel (%p333) target = $region76
          $region73: #{custom-call.8} parent=68 // loop_body
            %336 = vst [vmem:[%s330] sm:$0xff] %v331
            %v337 = vld [vmem:[%s329 + $0x8] sm:$0xff]
            %338 = vst [vmem:[%s330 + $0x8] sm:$0xff] %v337
            %v339 = vld [vmem:[%s329 + $0x10] sm:$0xff]
            %340 = vst [vmem:[%s330 + $0x10] sm:$0xff] %v339
            %v341 = vld [vmem:[%s329 + $0x18] sm:$0xff]
            %342 = vst [vmem:[%s330 + $0x18] sm:$0xff] %v341
            %v343 = vld [vmem:[%s329 + $0x20] sm:$0xff]
            %344 = vst [vmem:[%s330 + $0x20] sm:$0xff] %v343
            %v345 = vld [vmem:[%s329 + $0x28] sm:$0xff]
            %346 = vst [vmem:[%s330 + $0x28] sm:$0xff] %v345
            %v347 = vld [vmem:[%s329 + $0x30] sm:$0xff]
            %348 = vst [vmem:[%s330 + $0x30] sm:$0xff] %v347
            %v349 = vld [vmem:[%s329 + $0x38] sm:$0xff]
            %350 = vst [vmem:[%s330 + $0x38] sm:$0xff] %v349
          $region74: #{custom-call.8} parent=68 // loop_footer
            %s351 = scalar_lea.vmem %s329, 64
            %s352 = scalar_lea.vmem %s330, 64
            %v353 = vld [vmem:[%s329 + $0x40] sm:$0xff]
          $region75: #{custom-call.8} parent=68 // loop_footer_branch
            %354 = sbr.rel target = $region71
          $region76: #{custom-call.8} parent=68 // loop_exit
            _
          // While loop
          $region77: #{custom-call.8} parent=68 // loop_pre_header
            _
          $region78: #{custom-call.8} parent=68 // loop_header
            %s355 = sphi %s329, %s363
            %s356 = sphi %s330, %s364
            %v357 = vphi %v331, %v357
            %p358 = scmp.gt.s32.totalorder %s355, %s327
          $region79: #{custom-call.8} parent=68 // loop_header_branch
            %360 = sbr.rel (%p358) target = $region83
          $region80: #{custom-call.8} parent=68 // loop_body
            %v361 = vld [vmem:[%s355] sm:$0xff]
            %362 = vst [vmem:[%s356] sm:$0xff] %v361
          $region81: #{custom-call.8} parent=68 // loop_footer
            %s363 = scalar_lea.vmem %s355, 8
            %s364 = scalar_lea.vmem %s356, 8
          $region82: #{custom-call.8} parent=68 // loop_footer_branch
            %365 = sbr.rel target = $region78
          $region83: #{custom-call.8} parent=68 // loop_exit
            _
        $region69: #{custom-call.8} parent=64 // pred_fallthru
          _
        %s367 = ssub.s32 2, 1
        %s368 = smul.u32 0, 8
        %s369 = scalar_lea.vmem %s3, %s368
        %s370 = smul.u32 0, 8
        %s371 = scalar_lea.vmem [#allocation6], %s370
        %v372 = vld [vmem:[%s371] sm:%s367]
        %373 = vst [vmem:[%s369] sm:%s367] %v372
      $region65: #{custom-call.8} parent=60 // pred_fallthru
        _
    $region61: #{custom-call.8} parent=1 // pred_fallthru
      _
    // Predicated region
    $region84: #{custom-call.8} parent=1 // pred_check
      _
    $region85: #{custom-call.8} parent=1 // pred_check_branch
      %375 = sbr.rel (0) target = $region87
    $region86: #{custom-call.8} parent=1 // pred_region
      %377 = dma.done [#allocation4], 16
    $region87: #{custom-call.8} parent=1 // pred_fallthru
      _
    // Predicated region
    $region88: #{custom-call.8} parent=1 // pred_check
      _
    $region89: #{custom-call.8} parent=1 // pred_check_branch
      %379 = sbr.rel (0) target = $region91
    $region90: #{custom-call.8} parent=1 // pred_region
      _
    $region91: #{custom-call.8} parent=1 // pred_fallthru
      _
    %380 = vsyncpa [#allocation4], 1

// kernel: custom-call.10
$region0: #{custom-call.10}
  %s0 = inlined_call_operand.vmem [shape: f32[1,8,8], index: 0, kind: input, shape index: {}]
  %s1 = inlined_call_operand.vmem [shape: f32[1,8,8], index: 1, kind: output, shape index: {}]
  $region1: #{custom-call.10} parent=0
    #allocation0 [shape = 'u8[4096]{0}', space=vmem, size = 0x1000, scoped, tag = 'operand span for operand 0']
    #allocation1 [shape = 'u8[4096]{0}', space=vmem, size = 0x1000, scoped, tag = 'operand span for operand 1']
    #allocation2 [shape = 'f32[8,8]{1,0}', space=vmem, size = 0x1000, scoped, tag = 'rescaled input a']
    // Predicated region
    $region2: #{custom-call.10} parent=1 // pred_check
      _
    $region3: #{custom-call.10} parent=1 // pred_check_branch
      %3 = sbr.rel (0) target = $region5
    $region4: #{custom-call.10} parent=1 // pred_region
      // Predicated region
      $region6: #{custom-call.10} parent=4 // pred_check
        _
      $region7: #{custom-call.10} parent=4 // pred_check_branch
        %5 = sbr.rel (0) target = $region9
      $region8: #{custom-call.10} parent=4 // pred_region
        // Predicated region
        $region21: #{custom-call.10} parent=8 // pred_check
          _
        $region22: #{custom-call.10} parent=8 // pred_check_branch
          %21 = sbr.rel (0) target = $region24
        $region23: #{custom-call.10} parent=8 // pred_region
          loop: start=0, step=1, limit=1
          $region25: #{custom-call.10} parent=23 // loop_pre_header
            _
          $region26: #{custom-call.10} parent=23 // loop_header
            %s23 = sphi 0, %s27
            %p24 = scmp.ge.s32.totalorder %s23, 1
            %s28 = sphi %s0, %s0
            %s29 = sphi [#allocation0], [#allocation0]
          $region27: #{custom-call.10} parent=23 // loop_header_branch
            %26 = sbr.rel (%p24) target = $region31
          $region28: #{custom-call.10} parent=23 // loop_body
            %v30 = vld [vmem:[%s28] sm:$0xff]
            %31 = vst [vmem:[%s29] sm:$0xff] %v30
          $region29: #{custom-call.10} parent=23 // loop_footer
            %s27 = sadd.s32 1, %s23
          $region30: #{custom-call.10} parent=23 // loop_footer_branch
            %22 = sbr.rel target = $region26
          $region31: #{custom-call.10} parent=23 // loop_exit
            _
        $region24: #{custom-call.10} parent=8 // pred_fallthru
          _
        // Predicated region
        $region32: #{custom-call.10} parent=8 // pred_check
          _
        $region33: #{custom-call.10} parent=8 // pred_check_branch
          %33 = sbr.rel target = $region35
        $region34: #{custom-call.10} parent=8 // pred_region
          _
        $region35: #{custom-call.10} parent=8 // pred_fallthru
          _
      $region9: #{custom-call.10} parent=4 // pred_fallthru
        _
      // Predicated region
      $region10: #{custom-call.10} parent=4 // pred_check
        _
      $region11: #{custom-call.10} parent=4 // pred_check_branch
        %7 = sbr.rel target = $region13
      $region12: #{custom-call.10} parent=4 // pred_region
        %s9 = ssub.s32 256, 1
        loop: start=0, step=1, limit=1
        $region14: #{custom-call.10} parent=12 // loop_pre_header
          _
        $region15: #{custom-call.10} parent=12 // loop_header
          %s11 = sphi 0, %s15
          %p12 = scmp.ge.s32.totalorder %s11, 1
          %s16 = sphi %s0, %s0
          %s17 = sphi [#allocation0], [#allocation0]
        $region16: #{custom-call.10} parent=12 // loop_header_branch
          %14 = sbr.rel (%p12) target = $region20
        $region17: #{custom-call.10} parent=12 // loop_body
          %v18 = vld [vmem:[%s16] sm:%s9]
          %19 = vst [vmem:[%s17] sm:%s9] %v18
        $region18: #{custom-call.10} parent=12 // loop_footer
          %s15 = sadd.s32 1, %s11
        $region19: #{custom-call.10} parent=12 // loop_footer_branch
          %10 = sbr.rel target = $region15
        $region20: #{custom-call.10} parent=12 // loop_exit
          _
      $region13: #{custom-call.10} parent=4 // pred_fallthru
        _
    $region5: #{custom-call.10} parent=1 // pred_fallthru
      _
    %34 = vnop
    %v35 = vlaneseq
    %v36 = vand.u32 %v35, 127
    %vm37 = vcmp.lt.s32.totalorder %v36, 8
    %v38 = vlaneseq
    %v39 = vshrl.u32 %v38, 7
    %vm41 = vcmp.eq.s32.totalorder %v39, %v36
    %v42 = vld [vmem:[#allocation0] sm:$0xff]
    %v43 = vsel %vm41, %v42, 0.0
    %44 = vadd.xlane.f32.xlu0 %v43
    %v45 = vpop.xlane.xlu0 %44
    %vm46 = vcmp.ge.s32.totalorder %v39, %v36
    %vm47 = vmand %vm46, %vm37
    %v48 = vsel %vm47, %v42, 0.0
    %v49 = vrcp.pop %v45
    %v50 = vmul.f32 %v45, %v49
    %v51 = vsub.f32 1.0, %v50
    %v52 = vmul.f32 %v49, %v51
    %v53 = vadd.f32 %v49, %v52
    %vm54 = vweird.f32 %v45
    %vm55 = vweird.f32 %v49
    %vm56 = vmor %vm54, %vm55
    %v57 = vsel %vm56, %v49, %v53
    %v58 = vand.u32 2147483647, %v45
    %vm59 = vcmp.eq.f32.partialorder %v58, 8.507059e+37
    %v60 = vand.u32 %v45, 2147483648
    %v61 = vor.u32 1.1754944e-38, %v60
    %v62 = vsel %vm59, %v61, %v57
    %v63 = vmul.f32 %v48, %v62
    %64 = vst [vmem:[#allocation2] sm:$0xff] %v63
    %v65 = vlaneseq
    %v66 = vand.u32 %v65, 127
    %v67 = vlaneseq
    %v68 = vshrl.u32 %v67, 7
    %vm70 = vcmp.eq.s32.totalorder %v66, %v68
    %v71 = vlaneseq
    %v72 = vand.u32 %v71, 127
    %vm73 = vcmp.eq.s32.totalorder %v72, 0
    %v74 = vsel %vm73, 1.0, -1.0
    %v75 = vsel %vm70, %v74, 0.0
    %s76 = scalar_lea.vmem [#allocation2], 1
    %v77 = vld [vmem:[%s76] ss:$0 sm:$0xff]
    %v78 = vxor.u32 %v77, 2147483648
    %v79 = vlaneseq
    %v80 = vand.u32 %v79, 127
    %vm81 = vcmp.eq.s32.totalorder %v80, 1
    %v82 = vmul.f32 %v78, %v75
    %83 = vadd.xlane.f32.xlu0 %v82
    %v84 = vpop.xlane.xlu0 %83
    %v85 = vsel %vm81, %v84, %v75
    %s86 = scalar_lea.vmem [#allocation2], 2
    %v87 = vld [vmem:[%s86] ss:$0 sm:$0xff]
    %v88 = vxor.u32 %v87, 2147483648
    %v89 = vlaneseq
    %v90 = vand.u32 %v89, 127
    %vm91 = vcmp.eq.s32.totalorder %v90, 2
    %v92 = vmul.f32 %v88, %v85
    %93 = vadd.xlane.f32.xlu0 %v92
    %v94 = vpop.xlane.xlu0 %93
    %v95 = vsel %vm91, %v94, %v85
    %s96 = scalar_lea.vmem [#allocation2], 3
    %v97 = vld [vmem:[%s96] ss:$0 sm:$0xff]
    %v98 = vxor.u32 %v97, 2147483648
    %v99 = vlaneseq
    %v100 = vand.u32 %v99, 127
    %vm101 = vcmp.eq.s32.totalorder %v100, 3
    %v102 = vmul.f32 %v98, %v95
    %103 = vadd.xlane.f32.xlu0 %v102
    %v104 = vpop.xlane.xlu0 %103
    %v105 = vsel %vm101, %v104, %v95
    %s106 = scalar_lea.vmem [#allocation2], 4
    %v107 = vld [vmem:[%s106] ss:$0 sm:$0xff]
    %v108 = vxor.u32 %v107, 2147483648
    %v109 = vlaneseq
    %v110 = vand.u32 %v109, 127
    %vm111 = vcmp.eq.s32.totalorder %v110, 4
    %v112 = vmul.f32 %v108, %v105
    %113 = vadd.xlane.f32.xlu0 %v112
    %v114 = vpop.xlane.xlu0 %113
    %v115 = vsel %vm111, %v114, %v105
    %s116 = scalar_lea.vmem [#allocation2], 5
    %v117 = vld [vmem:[%s116] ss:$0 sm:$0xff]
    %v118 = vxor.u32 %v117, 2147483648
    %v119 = vlaneseq
    %v120 = vand.u32 %v119, 127
    %vm121 = vcmp.eq.s32.totalorder %v120, 5
    %v122 = vmul.f32 %v118, %v115
    %123 = vadd.xlane.f32.xlu0 %v122
    %v124 = vpop.xlane.xlu0 %123
    %v125 = vsel %vm121, %v124, %v115
    %s126 = scalar_lea.vmem [#allocation2], 6
    %v127 = vld [vmem:[%s126] ss:$0 sm:$0xff]
    %v128 = vxor.u32 %v127, 2147483648
    %v129 = vlaneseq
    %v130 = vand.u32 %v129, 127
    %vm131 = vcmp.eq.s32.totalorder %v130, 6
    %v132 = vmul.f32 %v128, %v125
    %133 = vadd.xlane.f32.xlu0 %v132
    %v134 = vpop.xlane.xlu0 %133
    %v135 = vsel %vm131, %v134, %v125
    %s136 = scalar_lea.vmem [#allocation2], 7
    %v137 = vld [vmem:[%s136] ss:$0 sm:$0xff]
    %v138 = vxor.u32 %v137, 2147483648
    %v139 = vlaneseq
    %v140 = vand.u32 %v139, 127
    %vm141 = vcmp.eq.s32.totalorder %v140, 7
    %v142 = vmul.f32 %v138, %v135
    %143 = vadd.xlane.f32.xlu0 %v142
    %v144 = vpop.xlane.xlu0 %143
    %v145 = vsel %vm141, %v144, %v135
    %v146 = vrcp.pop %v45
    %v147 = vmul.f32 %v45, %v146
    %v148 = vsub.f32 1.0, %v147
    %v149 = vmul.f32 %v146, %v148
    %v150 = vadd.f32 %v146, %v149
    %vm151 = vweird.f32 %v45
    %vm152 = vweird.f32 %v146
    %vm153 = vmor %vm151, %vm152
    %v154 = vsel %vm153, %v146, %v150
    %v155 = vand.u32 2147483647, %v45
    %vm156 = vcmp.eq.f32.partialorder %v155, 8.507059e+37
    %v157 = vand.u32 %v45, 2147483648
    %v158 = vor.u32 1.1754944e-38, %v157
    %v159 = vsel %vm156, %v158, %v154
    %v160 = vmul.f32 %v145, %v159
    %vm161 = vweird.f32 %v45
    %v162 = vsel %vm161, %v145, %v160
    %163 = vst [vmem:[#allocation1] sm:$0xff] %v162
    // Predicated region
    $region36: #{custom-call.10} parent=1 // pred_check
      _
    $region37: #{custom-call.10} parent=1 // pred_check_branch
      %165 = sbr.rel (0) target = $region39
    $region38: #{custom-call.10} parent=1 // pred_region
      // Predicated region
      $region40: #{custom-call.10} parent=38 // pred_check
        _
      $region41: #{custom-call.10} parent=38 // pred_check_branch
        %167 = sbr.rel (0) target = $region43
      $region42: #{custom-call.10} parent=38 // pred_region
        // Predicated region
        $region55: #{custom-call.10} parent=42 // pred_check
          _
        $region56: #{custom-call.10} parent=42 // pred_check_branch
          %183 = sbr.rel (0) target = $region58
        $region57: #{custom-call.10} parent=42 // pred_region
          loop: start=0, step=1, limit=1
          $region59: #{custom-call.10} parent=57 // loop_pre_header
            _
          $region60: #{custom-call.10} parent=57 // loop_header
            %s185 = sphi 0, %s189
            %p186 = scmp.ge.s32.totalorder %s185, 1
            %s190 = sphi [#allocation1], [#allocation1]
            %s191 = sphi %s1, %s1
          $region61: #{custom-call.10} parent=57 // loop_header_branch
            %188 = sbr.rel (%p186) target = $region65
          $region62: #{custom-call.10} parent=57 // loop_body
            %v192 = vld [vmem:[%s190] sm:$0xff]
            %193 = vst [vmem:[%s191] sm:$0xff] %v192
          $region63: #{custom-call.10} parent=57 // loop_footer
            %s189 = sadd.s32 1, %s185
          $region64: #{custom-call.10} parent=57 // loop_footer_branch
            %184 = sbr.rel target = $region60
          $region65: #{custom-call.10} parent=57 // loop_exit
            _
        $region58: #{custom-call.10} parent=42 // pred_fallthru
          _
        // Predicated region
        $region66: #{custom-call.10} parent=42 // pred_check
          _
        $region67: #{custom-call.10} parent=42 // pred_check_branch
          %195 = sbr.rel target = $region69
        $region68: #{custom-call.10} parent=42 // pred_region
          _
        $region69: #{custom-call.10} parent=42 // pred_fallthru
          _
      $region43: #{custom-call.10} parent=38 // pred_fallthru
        _
      // Predicated region
      $region44: #{custom-call.10} parent=38 // pred_check
        _
      $region45: #{custom-call.10} parent=38 // pred_check_branch
        %169 = sbr.rel target = $region47
      $region46: #{custom-call.10} parent=38 // pred_region
        %s171 = ssub.s32 256, 1
        loop: start=0, step=1, limit=1
        $region48: #{custom-call.10} parent=46 // loop_pre_header
          _
        $region49: #{custom-call.10} parent=46 // loop_header
          %s173 = sphi 0, %s177
          %p174 = scmp.ge.s32.totalorder %s173, 1
          %s178 = sphi [#allocation1], [#allocation1]
          %s179 = sphi %s1, %s1
        $region50: #{custom-call.10} parent=46 // loop_header_branch
          %176 = sbr.rel (%p174) target = $region54
        $region51: #{custom-call.10} parent=46 // loop_body
          %v180 = vld [vmem:[%s178] sm:%s171]
          %181 = vst [vmem:[%s179] sm:%s171] %v180
        $region52: #{custom-call.10} parent=46 // loop_footer
          %s177 = sadd.s32 1, %s173
        $region53: #{custom-call.10} parent=46 // loop_footer_branch
          %172 = sbr.rel target = $region49
        $region54: #{custom-call.10} parent=46 // loop_exit
          _
      $region47: #{custom-call.10} parent=38 // pred_fallthru
        _
    $region39: #{custom-call.10} parent=1 // pred_fallthru
      _
    %196 = vnop

// kernel: custom-call.9
$region0: #{custom-call.9}
  %s0 = inlined_call_operand.vmem [shape: f32[1,8,8], index: 0, kind: input, shape index: {}]
  %s1 = inlined_call_operand.vmem [shape: f32[1,8,8], index: 1, kind: output, shape index: {}]
  $region1: #{custom-call.9} parent=0
    #allocation0 [shape = 'u8[4096]{0}', space=vmem, size = 0x1000, scoped, tag = 'operand span for operand 0']
    #allocation1 [shape = 'u8[4096]{0}', space=vmem, size = 0x1000, scoped, tag = 'operand span for operand 1']
    #allocation2 [shape = 'f32[8,8]{1,0}', space=vmem, size = 0x1000, scoped, tag = 'rescaled input a']
    // Predicated region
    $region2: #{custom-call.9} parent=1 // pred_check
      _
    $region3: #{custom-call.9} parent=1 // pred_check_branch
      %3 = sbr.rel (0) target = $region5
    $region4: #{custom-call.9} parent=1 // pred_region
      // Predicated region
      $region6: #{custom-call.9} parent=4 // pred_check
        _
      $region7: #{custom-call.9} parent=4 // pred_check_branch
        %5 = sbr.rel (0) target = $region9
      $region8: #{custom-call.9} parent=4 // pred_region
        // Predicated region
        $region21: #{custom-call.9} parent=8 // pred_check
          _
        $region22: #{custom-call.9} parent=8 // pred_check_branch
          %21 = sbr.rel (0) target = $region24
        $region23: #{custom-call.9} parent=8 // pred_region
          loop: start=0, step=1, limit=1
          $region25: #{custom-call.9} parent=23 // loop_pre_header
            _
          $region26: #{custom-call.9} parent=23 // loop_header
            %s23 = sphi 0, %s27
            %p24 = scmp.ge.s32.totalorder %s23, 1
            %s28 = sphi %s0, %s0
            %s29 = sphi [#allocation0], [#allocation0]
          $region27: #{custom-call.9} parent=23 // loop_header_branch
            %26 = sbr.rel (%p24) target = $region31
          $region28: #{custom-call.9} parent=23 // loop_body
            %v30 = vld [vmem:[%s28] sm:$0xff]
            %31 = vst [vmem:[%s29] sm:$0xff] %v30
          $region29: #{custom-call.9} parent=23 // loop_footer
            %s27 = sadd.s32 1, %s23
          $region30: #{custom-call.9} parent=23 // loop_footer_branch
            %22 = sbr.rel target = $region26
          $region31: #{custom-call.9} parent=23 // loop_exit
            _
        $region24: #{custom-call.9} parent=8 // pred_fallthru
          _
        // Predicated region
        $region32: #{custom-call.9} parent=8 // pred_check
          _
        $region33: #{custom-call.9} parent=8 // pred_check_branch
          %33 = sbr.rel target = $region35
        $region34: #{custom-call.9} parent=8 // pred_region
          _
        $region35: #{custom-call.9} parent=8 // pred_fallthru
          _
      $region9: #{custom-call.9} parent=4 // pred_fallthru
        _
      // Predicated region
      $region10: #{custom-call.9} parent=4 // pred_check
        _
      $region11: #{custom-call.9} parent=4 // pred_check_branch
        %7 = sbr.rel target = $region13
      $region12: #{custom-call.9} parent=4 // pred_region
        %s9 = ssub.s32 256, 1
        loop: start=0, step=1, limit=1
        $region14: #{custom-call.9} parent=12 // loop_pre_header
          _
        $region15: #{custom-call.9} parent=12 // loop_header
          %s11 = sphi 0, %s15
          %p12 = scmp.ge.s32.totalorder %s11, 1
          %s16 = sphi %s0, %s0
          %s17 = sphi [#allocation0], [#allocation0]
        $region16: #{custom-call.9} parent=12 // loop_header_branch
          %14 = sbr.rel (%p12) target = $region20
        $region17: #{custom-call.9} parent=12 // loop_body
          %v18 = vld [vmem:[%s16] sm:%s9]
          %19 = vst [vmem:[%s17] sm:%s9] %v18
        $region18: #{custom-call.9} parent=12 // loop_footer
          %s15 = sadd.s32 1, %s11
        $region19: #{custom-call.9} parent=12 // loop_footer_branch
          %10 = sbr.rel target = $region15
        $region20: #{custom-call.9} parent=12 // loop_exit
          _
      $region13: #{custom-call.9} parent=4 // pred_fallthru
        _
    $region5: #{custom-call.9} parent=1 // pred_fallthru
      _
    %34 = vnop
    %v35 = vlaneseq
    %v36 = vand.u32 %v35, 127
    %vm37 = vcmp.lt.s32.totalorder %v36, 8
    %v38 = vlaneseq
    %v39 = vshrl.u32 %v38, 7
    %vm41 = vcmp.eq.s32.totalorder %v39, %v36
    %v42 = vld [vmem:[#allocation0] sm:$0xff]
    %v43 = vsel %vm41, %v42, 0.0
    %44 = vadd.xlane.f32.xlu0 %v43
    %v45 = vpop.xlane.xlu0 %44
    %vm46 = vcmp.le.s32.totalorder %v39, %v36
    %vm47 = vmand %vm46, %vm37
    %v48 = vsel %vm47, %v42, 0.0
    %v49 = vrcp.pop %v45
    %v50 = vmul.f32 %v45, %v49
    %v51 = vsub.f32 1.0, %v50
    %v52 = vmul.f32 %v49, %v51
    %v53 = vadd.f32 %v49, %v52
    %vm54 = vweird.f32 %v45
    %vm55 = vweird.f32 %v49
    %vm56 = vmor %vm54, %vm55
    %v57 = vsel %vm56, %v49, %v53
    %v58 = vand.u32 2147483647, %v45
    %vm59 = vcmp.eq.f32.partialorder %v58, 8.507059e+37
    %v60 = vand.u32 %v45, 2147483648
    %v61 = vor.u32 1.1754944e-38, %v60
    %v62 = vsel %vm59, %v61, %v57
    %v63 = vmul.f32 %v48, %v62
    %64 = vst [vmem:[#allocation2] sm:$0xff] %v63
    %v65 = vlaneseq
    %v66 = vand.u32 %v65, 127
    %v67 = vlaneseq
    %v68 = vshrl.u32 %v67, 7
    %vm70 = vcmp.eq.s32.totalorder %v66, %v68
    %v71 = vlaneseq
    %v72 = vand.u32 %v71, 127
    %vm73 = vcmp.eq.s32.totalorder %v72, 7
    %v74 = vsel %vm73, 1.0, -1.0
    %v75 = vsel %vm70, %v74, 0.0
    %s76 = scalar_lea.vmem [#allocation2], 6
    %v77 = vld [vmem:[%s76] ss:$0 sm:$0xff]
    %v78 = vxor.u32 %v77, 2147483648
    %v79 = vlaneseq
    %v80 = vand.u32 %v79, 127
    %vm81 = vcmp.eq.s32.totalorder %v80, 6
    %v82 = vmul.f32 %v78, %v75
    %83 = vadd.xlane.f32.xlu0 %v82
    %v84 = vpop.xlane.xlu0 %83
    %v85 = vsel %vm81, %v84, %v75
    %s86 = scalar_lea.vmem [#allocation2], 5
    %v87 = vld [vmem:[%s86] ss:$0 sm:$0xff]
    %v88 = vxor.u32 %v87, 2147483648
    %v89 = vlaneseq
    %v90 = vand.u32 %v89, 127
    %vm91 = vcmp.eq.s32.totalorder %v90, 5
    %v92 = vmul.f32 %v88, %v85
    %93 = vadd.xlane.f32.xlu0 %v92
    %v94 = vpop.xlane.xlu0 %93
    %v95 = vsel %vm91, %v94, %v85
    %s96 = scalar_lea.vmem [#allocation2], 4
    %v97 = vld [vmem:[%s96] ss:$0 sm:$0xff]
    %v98 = vxor.u32 %v97, 2147483648
    %v99 = vlaneseq
    %v100 = vand.u32 %v99, 127
    %vm101 = vcmp.eq.s32.totalorder %v100, 4
    %v102 = vmul.f32 %v98, %v95
    %103 = vadd.xlane.f32.xlu0 %v102
    %v104 = vpop.xlane.xlu0 %103
    %v105 = vsel %vm101, %v104, %v95
    %s106 = scalar_lea.vmem [#allocation2], 3
    %v107 = vld [vmem:[%s106] ss:$0 sm:$0xff]
    %v108 = vxor.u32 %v107, 2147483648
    %v109 = vlaneseq
    %v110 = vand.u32 %v109, 127
    %vm111 = vcmp.eq.s32.totalorder %v110, 3
    %v112 = vmul.f32 %v108, %v105
    %113 = vadd.xlane.f32.xlu0 %v112
    %v114 = vpop.xlane.xlu0 %113
    %v115 = vsel %vm111, %v114, %v105
    %s116 = scalar_lea.vmem [#allocation2], 2
    %v117 = vld [vmem:[%s116] ss:$0 sm:$0xff]
    %v118 = vxor.u32 %v117, 2147483648
    %v119 = vlaneseq
    %v120 = vand.u32 %v119, 127
    %vm121 = vcmp.eq.s32.totalorder %v120, 2
    %v122 = vmul.f32 %v118, %v115
    %123 = vadd.xlane.f32.xlu0 %v122
    %v124 = vpop.xlane.xlu0 %123
    %v125 = vsel %vm121, %v124, %v115
    %s126 = scalar_lea.vmem [#allocation2], 1
    %v127 = vld [vmem:[%s126] ss:$0 sm:$0xff]
    %v128 = vxor.u32 %v127, 2147483648
    %v129 = vlaneseq
    %v130 = vand.u32 %v129, 127
    %vm131 = vcmp.eq.s32.totalorder %v130, 1
    %v132 = vmul.f32 %v128, %v125
    %133 = vadd.xlane.f32.xlu0 %v132
    %v134 = vpop.xlane.xlu0 %133
    %v135 = vsel %vm131, %v134, %v125
    %v136 = vld [vmem:[#allocation2] ss:$0 sm:$0xff]
    %v137 = vxor.u32 %v136, 2147483648
    %v138 = vlaneseq
    %v139 = vand.u32 %v138, 127
    %vm140 = vcmp.eq.s32.totalorder %v139, 0
    %v141 = vmul.f32 %v137, %v135
    %142 = vadd.xlane.f32.xlu0 %v141
    %v143 = vpop.xlane.xlu0 %142
    %v144 = vsel %vm140, %v143, %v135
    %v145 = vrcp.pop %v45
    %v146 = vmul.f32 %v45, %v145
    %v147 = vsub.f32 1.0, %v146
    %v148 = vmul.f32 %v145, %v147
    %v149 = vadd.f32 %v145, %v148
    %vm150 = vweird.f32 %v45
    %vm151 = vweird.f32 %v145
    %vm152 = vmor %vm150, %vm151
    %v153 = vsel %vm152, %v145, %v149
    %v154 = vand.u32 2147483647, %v45
    %vm155 = vcmp.eq.f32.partialorder %v154, 8.507059e+37
    %v156 = vand.u32 %v45, 2147483648
    %v157 = vor.u32 1.1754944e-38, %v156
    %v158 = vsel %vm155, %v157, %v153
    %v159 = vmul.f32 %v144, %v158
    %vm160 = vweird.f32 %v45
    %v161 = vsel %vm160, %v144, %v159
    %162 = vst [vmem:[#allocation1] sm:$0xff] %v161
    // Predicated region
    $region36: #{custom-call.9} parent=1 // pred_check
      _
    $region37: #{custom-call.9} parent=1 // pred_check_branch
      %164 = sbr.rel (0) target = $region39
    $region38: #{custom-call.9} parent=1 // pred_region
      // Predicated region
      $region40: #{custom-call.9} parent=38 // pred_check
        _
      $region41: #{custom-call.9} parent=38 // pred_check_branch
        %166 = sbr.rel (0) target = $region43
      $region42: #{custom-call.9} parent=38 // pred_region
        // Predicated region
        $region55: #{custom-call.9} parent=42 // pred_check
          _
        $region56: #{custom-call.9} parent=42 // pred_check_branch
          %182 = sbr.rel (0) target = $region58
        $region57: #{custom-call.9} parent=42 // pred_region
          loop: start=0, step=1, limit=1
          $region59: #{custom-call.9} parent=57 // loop_pre_header
            _
          $region60: #{custom-call.9} parent=57 // loop_header
            %s184 = sphi 0, %s188
            %p185 = scmp.ge.s32.totalorder %s184, 1
            %s189 = sphi [#allocation1], [#allocation1]
            %s190 = sphi %s1, %s1
          $region61: #{custom-call.9} parent=57 // loop_header_branch
            %187 = sbr.rel (%p185) target = $region65
          $region62: #{custom-call.9} parent=57 // loop_body
            %v191 = vld [vmem:[%s189] sm:$0xff]
            %192 = vst [vmem:[%s190] sm:$0xff] %v191
          $region63: #{custom-call.9} parent=57 // loop_footer
            %s188 = sadd.s32 1, %s184
          $region64: #{custom-call.9} parent=57 // loop_footer_branch
            %183 = sbr.rel target = $region60
          $region65: #{custom-call.9} parent=57 // loop_exit
            _
        $region58: #{custom-call.9} parent=42 // pred_fallthru
          _
        // Predicated region
        $region66: #{custom-call.9} parent=42 // pred_check
          _
        $region67: #{custom-call.9} parent=42 // pred_check_branch
          %194 = sbr.rel target = $region69
        $region68: #{custom-call.9} parent=42 // pred_region
          _
        $region69: #{custom-call.9} parent=42 // pred_fallthru
          _
      $region43: #{custom-call.9} parent=38 // pred_fallthru
        _
      // Predicated region
      $region44: #{custom-call.9} parent=38 // pred_check
        _
      $region45: #{custom-call.9} parent=38 // pred_check_branch
        %168 = sbr.rel target = $region47
      $region46: #{custom-call.9} parent=38 // pred_region
        %s170 = ssub.s32 256, 1
        loop: start=0, step=1, limit=1
        $region48: #{custom-call.9} parent=46 // loop_pre_header
          _
        $region49: #{custom-call.9} parent=46 // loop_header
          %s172 = sphi 0, %s176
          %p173 = scmp.ge.s32.totalorder %s172, 1
          %s177 = sphi [#allocation1], [#allocation1]
          %s178 = sphi %s1, %s1
        $region50: #{custom-call.9} parent=46 // loop_header_branch
          %175 = sbr.rel (%p173) target = $region54
        $region51: #{custom-call.9} parent=46 // loop_body
          %v179 = vld [vmem:[%s177] sm:%s170]
          %180 = vst [vmem:[%s178] sm:%s170] %v179
        $region52: #{custom-call.9} parent=46 // loop_footer
          %s176 = sadd.s32 1, %s172
        $region53: #{custom-call.9} parent=46 // loop_footer_branch
          %171 = sbr.rel target = $region49
        $region54: #{custom-call.9} parent=46 // loop_exit
          _
      $region47: #{custom-call.9} parent=38 // pred_fallthru
        _
    $region39: #{custom-call.9} parent=1 // pred_fallthru
      _
    %195 = vnop

// kernel: labrbf_forward.2
$region0: #{labrbf_forward.2}
  #allocation0 [shape = 'u32[]', space=smem, size = 0x4, offset = 0x4, fixed_abs, tag = 'smem constant byte address 0x4 - core index']
  #allocation1 [shape = 'u32[72,128]{1,0:T(1,128)}', space=vmem, size = 0x9000, scoped, tag = 'internal scratch']
  %s0 = inlined_call_operand.vmem [shape: f32[8,128], index: 0, kind: input, shape index: {}]
  %s1 = inlined_call_operand.vmem [shape: f32[8,128], index: 1, kind: input, shape index: {}, may-alias: {1,2}]
  %s2 = inlined_call_operand.vmem [shape: f32[8,128], index: 2, kind: input, shape index: {}, may-alias: {1,2}]
  %s3 = inlined_call_operand.vmem [shape: f32[128,128], index: 3, kind: output, shape index: {}]
  %s4 = sld [smem:[#allocation0]]
  $region30: #{labrbf_forward.2} parent=0
    _
  %s6 = ssub.s32 1, %s4
  %s7 = scalar_select 0, %s6, %s4
  // Predicated region
  $region2: #{labrbf_forward.2} parent=0 // pred_check
    _
  $region3: #{labrbf_forward.2} parent=0 // pred_check_branch
    %9 = sbr.rel (0) target = $region5
  $region4: #{labrbf_forward.2} parent=0 // pred_region
    _
  $region5: #{labrbf_forward.2} parent=0 // pred_fallthru
    _
  // Predicated region
  $region6: #{labrbf_forward.2} parent=0 // pred_check
    _
  $region7: #{labrbf_forward.2} parent=0 // pred_check_branch
    %11 = sbr.rel (0) target = $region9
  $region8: #{labrbf_forward.2} parent=0 // pred_region
    _
  $region9: #{labrbf_forward.2} parent=0 // pred_fallthru
    _
  // Predicated region
  $region10: #{labrbf_forward.2} parent=0 // pred_check
    _
  $region11: #{labrbf_forward.2} parent=0 // pred_check_branch
    %13 = sbr.rel (0) target = $region13
  $region12: #{labrbf_forward.2} parent=0 // pred_region
    _
  $region13: #{labrbf_forward.2} parent=0 // pred_fallthru
    _
  %v14 = vld [vmem:[%s0] sm:$0xff]
  %v15 = vadd.f32 %v14, 0.0001
  %v16 = vld [vmem:[%s1] sm:$0xff]
  %v17 = vmul.f32 %v15, %v15
  %v18 = vmul.f32 %v17, %v16
  %v19 = vmul.f32 %v16, %v16
  %v20 = vmul.f32 %v17, %v19
  %v21 = vld [vmem:[%s2] sm:$0xff]
  %v22 = vmul.f32 %v21, %v21
  %v23 = vmul.f32 %v21, -2.0
  %24 = vxpose.xlu0.b32.start [1/16] %v17, 128
  %25 = vxpose.xlu0.b32.cont [2/16] %v18, 128
  %26 = vxpose.xlu0.b32.cont [3/16] %v20, 128
  %27 = vxpose.xlu0.b32.cont [4/16] 0.0, 128
  %28 = vxpose.xlu0.b32.cont [5/16] 0.0, 128
  %29 = vxpose.xlu0.b32.cont [6/16] 0.0, 128
  %30 = vxpose.xlu0.b32.cont [7/16] 0.0, 128
  %31 = vxpose.xlu0.b32.cont [8/16] 0.0, 128
  %32 = vxpose.xlu0.b32.cont [9/16] 0.0, 128
  %33 = vxpose.xlu0.b32.cont [10/16] 0.0, 128
  %34 = vxpose.xlu0.b32.cont [11/16] 0.0, 128
  %35 = vxpose.xlu0.b32.cont [12/16] 0.0, 128
  %36 = vxpose.xlu0.b32.cont [13/16] 0.0, 128
  %37 = vxpose.xlu0.b32.cont [14/16] 0.0, 128
  %38 = vxpose.xlu0.b32.cont [15/16] 0.0, 128
  %39 = vxpose.xlu0.b32.end [16/16] 0.0, 128
  %v40 = vpop.trf.xlu0
  %v41 = vpop.trf.xlu0
  %v42 = vpop.trf.xlu0
  %v43 = vpop.trf.xlu0
  %v44 = vpop.trf.xlu0
  %v45 = vpop.trf.xlu0
  %v46 = vpop.trf.xlu0
  %v47 = vpop.trf.xlu0
  %v48 = vpop.trf.xlu0
  %v49 = vpop.trf.xlu0
  %v50 = vpop.trf.xlu0
  %v51 = vpop.trf.xlu0
  %v52 = vpop.trf.xlu0
  %v53 = vpop.trf.xlu0
  %v54 = vpop.trf.xlu0
  %v55 = vpop.trf.xlu0
  %vm56 = vcmask 195584
  %v58 = vsel %vm56, %v40, 0
  %v61 = vsel %vm56, %v41, 0
  %v64 = vsel %vm56, %v42, 0
  %v67 = vsel %vm56, %v43, 0
  %v70 = vsel %vm56, %v44, 0
  %v73 = vsel %vm56, %v45, 0
  %v76 = vsel %vm56, %v46, 0
  %v79 = vsel %vm56, %v47, 0
  %v82 = vsel %vm56, %v48, 0
  %v85 = vsel %vm56, %v49, 0
  %v88 = vsel %vm56, %v50, 0
  %v91 = vsel %vm56, %v51, 0
  %v94 = vsel %vm56, %v52, 0
  %v97 = vsel %vm56, %v53, 0
  %v100 = vsel %vm56, %v54, 0
  %v103 = vsel %vm56, %v55, 0
  %105 = vmatpush.msra.mxu0 0.0
  %106 = vmatpush.msra.mxu0 0.0
  %107 = vmatpush.msra.mxu0 0.0
  %108 = vmatpush.msra.mxu0 0.0
  %109 = vmatpush.msra.mxu0 0.0
  %110 = vmatpush.msra.mxu0 0.0
  %111 = vmatpush.msra.mxu0 0.0
  %112 = vmatpush.msra.mxu0 0.0
  %113 = vmatpush.msra.mxu0 0.0
  %114 = vmatpush.msra.mxu0 0.0
  %115 = vmatpush.msra.mxu0 0.0
  %116 = vmatpush.msra.mxu0 0.0
  %117 = vmatpush.msra.mxu0 0.0
  %118 = vmatpush.msra.mxu0 1.0
  %119 = vmatpush.msra.mxu0 %v23
  %120 = vmatpush.msra.mxu0 %v22
  %121 = vmatmul.f32.gmra.mxu0 %v58
  %v122 = vpop.f32.mrf.mxu0
  %v123 = vadd.f32 0.0, %v122
  %124 = vmatmul.f32.gmra.mxu0 %v61
  %v125 = vpop.f32.mrf.mxu0
  %v126 = vadd.f32 0.0, %v125
  %127 = vmatmul.f32.gmra.mxu0 %v64
  %v128 = vpop.f32.mrf.mxu0
  %v129 = vadd.f32 0.0, %v128
  %130 = vmatmul.f32.gmra.mxu0 %v67
  %v131 = vpop.f32.mrf.mxu0
  %v132 = vadd.f32 0.0, %v131
  %133 = vmatmul.f32.gmra.mxu0 %v70
  %v134 = vpop.f32.mrf.mxu0
  %v135 = vadd.f32 0.0, %v134
  %136 = vmatmul.f32.gmra.mxu0 %v73
  %v137 = vpop.f32.mrf.mxu0
  %v138 = vadd.f32 0.0, %v137
  %139 = vmatmul.f32.gmra.mxu0 %v76
  %v140 = vpop.f32.mrf.mxu0
  %v141 = vadd.f32 0.0, %v140
  %142 = vmatmul.f32.gmra.mxu0 %v79
  %v143 = vpop.f32.mrf.mxu0
  %v144 = vadd.f32 0.0, %v143
  %145 = vmatmul.f32.gmra.mxu0 %v82
  %v146 = vpop.f32.mrf.mxu0
  %v147 = vadd.f32 0.0, %v146
  %148 = vmatmul.f32.gmra.mxu0 %v85
  %v149 = vpop.f32.mrf.mxu0
  %v150 = vadd.f32 0.0, %v149
  %151 = vmatmul.f32.gmra.mxu0 %v88
  %v152 = vpop.f32.mrf.mxu0
  %v153 = vadd.f32 0.0, %v152
  %154 = vmatmul.f32.gmra.mxu0 %v91
  %v155 = vpop.f32.mrf.mxu0
  %v156 = vadd.f32 0.0, %v155
  %157 = vmatmul.f32.gmra.mxu0 %v94
  %v158 = vpop.f32.mrf.mxu0
  %v159 = vadd.f32 0.0, %v158
  %160 = vmatmul.f32.gmra.mxu0 %v97
  %v161 = vpop.f32.mrf.mxu0
  %v162 = vadd.f32 0.0, %v161
  %163 = vmatmul.f32.gmra.mxu0 %v100
  %v164 = vpop.f32.mrf.mxu0
  %v165 = vadd.f32 0.0, %v164
  %166 = vmatmul.f32.gmra.mxu0 %v103
  %v167 = vpop.f32.mrf.mxu0
  %v168 = vadd.f32 0.0, %v167
  %169 = vdwg.mxu0
  %v170 = vmax.f32 %v123, 0.0
  %v171 = vmax.f32 %v126, 0.0
  %v172 = vmax.f32 %v129, 0.0
  %v173 = vmax.f32 %v132, 0.0
  %v174 = vmax.f32 %v135, 0.0
  %v175 = vmax.f32 %v138, 0.0
  %v176 = vmax.f32 %v141, 0.0
  %v177 = vmax.f32 %v144, 0.0
  %v178 = vmax.f32 %v147, 0.0
  %v179 = vmax.f32 %v150, 0.0
  %v180 = vmax.f32 %v153, 0.0
  %v181 = vmax.f32 %v156, 0.0
  %v182 = vmax.f32 %v159, 0.0
  %v183 = vmax.f32 %v162, 0.0
  %v184 = vmax.f32 %v165, 0.0
  %v185 = vmax.f32 %v168, 0.0
  %v186 = vrsqrt.pop %v170
  %v187 = vmul.f32 %v186, %v170
  %v188 = vmul.f32 %v187, %v186
  %v189 = vmul.f32 0.5, %v188
  %v190 = vsub.f32 1.5, %v189
  %v191 = vmul.f32 %v186, %v190
  %v192 = vmul.f32 %v170, %v191
  %vm193 = vcmp.eq.f32.partialorder %v170, inf
  %v194 = vsel %vm193, %v170, %v192
  %vm195 = vcmp.eq.f32.partialorder %v170, 0.0
  %v196 = vand.u32 %v170, 2147483648
  %v197 = vsel %vm195, %v196, %v194
  %v198 = vrsqrt.pop %v171
  %v199 = vmul.f32 %v198, %v171
  %v200 = vmul.f32 %v199, %v198
  %v201 = vmul.f32 0.5, %v200
  %v202 = vsub.f32 1.5, %v201
  %v203 = vmul.f32 %v198, %v202
  %v204 = vmul.f32 %v171, %v203
  %vm205 = vcmp.eq.f32.partialorder %v171, inf
  %v206 = vsel %vm205, %v171, %v204
  %vm207 = vcmp.eq.f32.partialorder %v171, 0.0
  %v208 = vand.u32 %v171, 2147483648
  %v209 = vsel %vm207, %v208, %v206
  %v210 = vrsqrt.pop %v172
  %v211 = vmul.f32 %v210, %v172
  %v212 = vmul.f32 %v211, %v210
  %v213 = vmul.f32 0.5, %v212
  %v214 = vsub.f32 1.5, %v213
  %v215 = vmul.f32 %v210, %v214
  %v216 = vmul.f32 %v172, %v215
  %vm217 = vcmp.eq.f32.partialorder %v172, inf
  %v218 = vsel %vm217, %v172, %v216
  %vm219 = vcmp.eq.f32.partialorder %v172, 0.0
  %v220 = vand.u32 %v172, 2147483648
  %v221 = vsel %vm219, %v220, %v218
  %v222 = vrsqrt.pop %v173
  %v223 = vmul.f32 %v222, %v173
  %v224 = vmul.f32 %v223, %v222
  %v225 = vmul.f32 0.5, %v224
  %v226 = vsub.f32 1.5, %v225
  %v227 = vmul.f32 %v222, %v226
  %v228 = vmul.f32 %v173, %v227
  %vm229 = vcmp.eq.f32.partialorder %v173, inf
  %v230 = vsel %vm229, %v173, %v228
  %vm231 = vcmp.eq.f32.partialorder %v173, 0.0
  %v232 = vand.u32 %v173, 2147483648
  %v233 = vsel %vm231, %v232, %v230
  %v234 = vrsqrt.pop %v174
  %v235 = vmul.f32 %v234, %v174
  %v236 = vmul.f32 %v235, %v234
  %v237 = vmul.f32 0.5, %v236
  %v238 = vsub.f32 1.5, %v237
  %v239 = vmul.f32 %v234, %v238
  %v240 = vmul.f32 %v174, %v239
  %vm241 = vcmp.eq.f32.partialorder %v174, inf
  %v242 = vsel %vm241, %v174, %v240
  %vm243 = vcmp.eq.f32.partialorder %v174, 0.0
  %v244 = vand.u32 %v174, 2147483648
  %v245 = vsel %vm243, %v244, %v242
  %v246 = vrsqrt.pop %v175
  %v247 = vmul.f32 %v246, %v175
  %v248 = vmul.f32 %v247, %v246
  %v249 = vmul.f32 0.5, %v248
  %v250 = vsub.f32 1.5, %v249
  %v251 = vmul.f32 %v246, %v250
  %v252 = vmul.f32 %v175, %v251
  %vm253 = vcmp.eq.f32.partialorder %v175, inf
  %v254 = vsel %vm253, %v175, %v252
  %vm255 = vcmp.eq.f32.partialorder %v175, 0.0
  %v256 = vand.u32 %v175, 2147483648
  %v257 = vsel %vm255, %v256, %v254
  %v258 = vrsqrt.pop %v176
  %v259 = vmul.f32 %v258, %v176
  %v260 = vmul.f32 %v259, %v258
  %v261 = vmul.f32 0.5, %v260
  %v262 = vsub.f32 1.5, %v261
  %v263 = vmul.f32 %v258, %v262
  %v264 = vmul.f32 %v176, %v263
  %vm265 = vcmp.eq.f32.partialorder %v176, inf
  %v266 = vsel %vm265, %v176, %v264
  %vm267 = vcmp.eq.f32.partialorder %v176, 0.0
  %v268 = vand.u32 %v176, 2147483648
  %v269 = vsel %vm267, %v268, %v266
  %v270 = vrsqrt.pop %v177
  %v271 = vmul.f32 %v270, %v177
  %v272 = vmul.f32 %v271, %v270
  %v273 = vmul.f32 0.5, %v272
  %v274 = vsub.f32 1.5, %v273
  %v275 = vmul.f32 %v270, %v274
  %v276 = vmul.f32 %v177, %v275
  %vm277 = vcmp.eq.f32.partialorder %v177, inf
  %v278 = vsel %vm277, %v177, %v276
  %vm279 = vcmp.eq.f32.partialorder %v177, 0.0
  %v280 = vand.u32 %v177, 2147483648
  %v281 = vsel %vm279, %v280, %v278
  %v282 = vrsqrt.pop %v178
  %v283 = vmul.f32 %v282, %v178
  %v284 = vmul.f32 %v283, %v282
  %v285 = vmul.f32 0.5, %v284
  %v286 = vsub.f32 1.5, %v285
  %v287 = vmul.f32 %v282, %v286
  %v288 = vmul.f32 %v178, %v287
  %vm289 = vcmp.eq.f32.partialorder %v178, inf
  %v290 = vsel %vm289, %v178, %v288
  %vm291 = vcmp.eq.f32.partialorder %v178, 0.0
  %v292 = vand.u32 %v178, 2147483648
  %v293 = vsel %vm291, %v292, %v290
  %v294 = vrsqrt.pop %v179
  %v295 = vmul.f32 %v294, %v179
  %v296 = vmul.f32 %v295, %v294
  %v297 = vmul.f32 0.5, %v296
  %v298 = vsub.f32 1.5, %v297
  %v299 = vmul.f32 %v294, %v298
  %v300 = vmul.f32 %v179, %v299
  %vm301 = vcmp.eq.f32.partialorder %v179, inf
  %v302 = vsel %vm301, %v179, %v300
  %vm303 = vcmp.eq.f32.partialorder %v179, 0.0
  %v304 = vand.u32 %v179, 2147483648
  %v305 = vsel %vm303, %v304, %v302
  %v306 = vrsqrt.pop %v180
  %v307 = vmul.f32 %v306, %v180
  %v308 = vmul.f32 %v307, %v306
  %v309 = vmul.f32 0.5, %v308
  %v310 = vsub.f32 1.5, %v309
  %v311 = vmul.f32 %v306, %v310
  %v312 = vmul.f32 %v180, %v311
  %vm313 = vcmp.eq.f32.partialorder %v180, inf
  %v314 = vsel %vm313, %v180, %v312
  %vm315 = vcmp.eq.f32.partialorder %v180, 0.0
  %v316 = vand.u32 %v180, 2147483648
  %v317 = vsel %vm315, %v316, %v314
  %v318 = vrsqrt.pop %v181
  %v319 = vmul.f32 %v318, %v181
  %v320 = vmul.f32 %v319, %v318
  %v321 = vmul.f32 0.5, %v320
  %v322 = vsub.f32 1.5, %v321
  %v323 = vmul.f32 %v318, %v322
  %v324 = vmul.f32 %v181, %v323
  %vm325 = vcmp.eq.f32.partialorder %v181, inf
  %v326 = vsel %vm325, %v181, %v324
  %vm327 = vcmp.eq.f32.partialorder %v181, 0.0
  %v328 = vand.u32 %v181, 2147483648
  %v329 = vsel %vm327, %v328, %v326
  %v330 = vrsqrt.pop %v182
  %v331 = vmul.f32 %v330, %v182
  %v332 = vmul.f32 %v331, %v330
  %v333 = vmul.f32 0.5, %v332
  %v334 = vsub.f32 1.5, %v333
  %v335 = vmul.f32 %v330, %v334
  %v336 = vmul.f32 %v182, %v335
  %vm337 = vcmp.eq.f32.partialorder %v182, inf
  %v338 = vsel %vm337, %v182, %v336
  %vm339 = vcmp.eq.f32.partialorder %v182, 0.0
  %v340 = vand.u32 %v182, 2147483648
  %v341 = vsel %vm339, %v340, %v338
  %v342 = vrsqrt.pop %v183
  %v343 = vmul.f32 %v342, %v183
  %v344 = vmul.f32 %v343, %v342
  %v345 = vmul.f32 0.5, %v344
  %v346 = vsub.f32 1.5, %v345
  %v347 = vmul.f32 %v342, %v346
  %v348 = vmul.f32 %v183, %v347
  %vm349 = vcmp.eq.f32.partialorder %v183, inf
  %v350 = vsel %vm349, %v183, %v348
  %vm351 = vcmp.eq.f32.partialorder %v183, 0.0
  %v352 = vand.u32 %v183, 2147483648
  %v353 = vsel %vm351, %v352, %v350
  %v354 = vrsqrt.pop %v184
  %v355 = vmul.f32 %v354, %v184
  %v356 = vmul.f32 %v355, %v354
  %v357 = vmul.f32 0.5, %v356
  %v358 = vsub.f32 1.5, %v357
  %v359 = vmul.f32 %v354, %v358
  %v360 = vmul.f32 %v184, %v359
  %vm361 = vcmp.eq.f32.partialorder %v184, inf
  %v362 = vsel %vm361, %v184, %v360
  %vm363 = vcmp.eq.f32.partialorder %v184, 0.0
  %v364 = vand.u32 %v184, 2147483648
  %v365 = vsel %vm363, %v364, %v362
  %v366 = vrsqrt.pop %v185
  %v367 = vmul.f32 %v366, %v185
  %v368 = vmul.f32 %v367, %v366
  %v369 = vmul.f32 0.5, %v368
  %v370 = vsub.f32 1.5, %v369
  %v371 = vmul.f32 %v366, %v370
  %v372 = vmul.f32 %v185, %v371
  %vm373 = vcmp.eq.f32.partialorder %v185, inf
  %v374 = vsel %vm373, %v185, %v372
  %vm375 = vcmp.eq.f32.partialorder %v185, 0.0
  %v376 = vand.u32 %v185, 2147483648
  %v377 = vsel %vm375, %v376, %v374
  %v378 = vsub.f32 0.0, %v197
  %v379 = vsub.f32 0.0, %v209
  %v380 = vsub.f32 0.0, %v221
  %v381 = vsub.f32 0.0, %v233
  %v382 = vsub.f32 0.0, %v245
  %v383 = vsub.f32 0.0, %v257
  %v384 = vsub.f32 0.0, %v269
  %v385 = vsub.f32 0.0, %v281
  %v386 = vsub.f32 0.0, %v293
  %v387 = vsub.f32 0.0, %v305
  %v388 = vsub.f32 0.0, %v317
  %v389 = vsub.f32 0.0, %v329
  %v390 = vsub.f32 0.0, %v341
  %v391 = vsub.f32 0.0, %v353
  %v392 = vsub.f32 0.0, %v365
  %v393 = vsub.f32 0.0, %v377
  %v394 = vmul.f32 %v378, 1.442695
  %v395 = vpow.pop %v394
  %v396 = vmul.f32 %v379, 1.442695
  %v397 = vpow.pop %v396
  %v398 = vmul.f32 %v380, 1.442695
  %v399 = vpow.pop %v398
  %v400 = vmul.f32 %v381, 1.442695
  %v401 = vpow.pop %v400
  %v402 = vmul.f32 %v382, 1.442695
  %v403 = vpow.pop %v402
  %v404 = vmul.f32 %v383, 1.442695
  %v405 = vpow.pop %v404
  %v406 = vmul.f32 %v384, 1.442695
  %v407 = vpow.pop %v406
  %v408 = vmul.f32 %v385, 1.442695
  %v409 = vpow.pop %v408
  %v410 = vmul.f32 %v386, 1.442695
  %v411 = vpow.pop %v410
  %v412 = vmul.f32 %v387, 1.442695
  %v413 = vpow.pop %v412
  %v414 = vmul.f32 %v388, 1.442695
  %v415 = vpow.pop %v414
  %v416 = vmul.f32 %v389, 1.442695
  %v417 = vpow.pop %v416
  %v418 = vmul.f32 %v390, 1.442695
  %v419 = vpow.pop %v418
  %v420 = vmul.f32 %v391, 1.442695
  %v421 = vpow.pop %v420
  %v422 = vmul.f32 %v392, 1.442695
  %v423 = vpow.pop %v422
  %v424 = vmul.f32 %v393, 1.442695
  %v425 = vpow.pop %v424
  %p426 = scmp.eq.s32.totalorder 0, 0
  // Predicated region
  $region14: #{labrbf_forward.2} parent=0 // pred_check
    %p427 = pneg %p426
  $region15: #{labrbf_forward.2} parent=0 // pred_check_branch
    %429 = sbr.rel (%p427) target = $region17
  $region16: #{labrbf_forward.2} parent=0 // pred_region
    %v430 = vlaneseq
    %v431 = vshrl.u32 %v430, 7
    %v432 = vadd.s32 %v431, 8
    %v433 = vadd.s32 %v431, 16
    %v434 = vadd.s32 %v431, 24
    %v435 = vadd.s32 %v431, 32
    %v436 = vadd.s32 %v431, 40
    %v437 = vadd.s32 %v431, 48
    %v438 = vadd.s32 %v431, 56
    %v439 = vadd.s32 %v431, 64
    %v440 = vadd.s32 %v431, 72
    %v441 = vadd.s32 %v431, 80
    %v442 = vadd.s32 %v431, 88
    %v443 = vadd.s32 %v431, 96
    %v444 = vadd.s32 %v431, 104
    %v445 = vadd.s32 %v431, 112
    %v446 = vadd.s32 %v431, 120
    %v447 = vlaneseq
    %v448 = vand.u32 %v447, 127
    %vm449 = vcmp.eq.s32.totalorder %v431, %v448
    %vm450 = vcmp.eq.s32.totalorder %v432, %v448
    %vm451 = vcmp.eq.s32.totalorder %v433, %v448
    %vm452 = vcmp.eq.s32.totalorder %v434, %v448
    %vm453 = vcmp.eq.s32.totalorder %v435, %v448
    %vm454 = vcmp.eq.s32.totalorder %v436, %v448
    %vm455 = vcmp.eq.s32.totalorder %v437, %v448
    %vm456 = vcmp.eq.s32.totalorder %v438, %v448
    %vm457 = vcmp.eq.s32.totalorder %v439, %v448
    %vm458 = vcmp.eq.s32.totalorder %v440, %v448
    %vm459 = vcmp.eq.s32.totalorder %v441, %v448
    %vm460 = vcmp.eq.s32.totalorder %v442, %v448
    %vm461 = vcmp.eq.s32.totalorder %v443, %v448
    %vm462 = vcmp.eq.s32.totalorder %v444, %v448
    %vm463 = vcmp.eq.s32.totalorder %v445, %v448
    %vm464 = vcmp.eq.s32.totalorder %v446, %v448
    %v465 = vsel %vm449, 1.001, %v395
    %v466 = vsel %vm450, 1.001, %v397
    %v467 = vsel %vm451, 1.001, %v399
    %v468 = vsel %vm452, 1.001, %v401
    %v469 = vsel %vm453, 1.001, %v403
    %v470 = vsel %vm454, 1.001, %v405
    %v471 = vsel %vm455, 1.001, %v407
    %v472 = vsel %vm456, 1.001, %v409
    %v473 = vsel %vm457, 1.001, %v411
    %v474 = vsel %vm458, 1.001, %v413
    %v475 = vsel %vm459, 1.001, %v415
    %v476 = vsel %vm460, 1.001, %v417
    %v477 = vsel %vm461, 1.001, %v419
    %v478 = vsel %vm462, 1.001, %v421
    %v479 = vsel %vm463, 1.001, %v423
    %v480 = vsel %vm464, 1.001, %v425
    %481 = vst [vmem:[%s3] sm:$0xff] %v465
    %482 = vst [vmem:[%s3 + $0x8] sm:$0xff] %v466
    %483 = vst [vmem:[%s3 + $0x10] sm:$0xff] %v467
    %484 = vst [vmem:[%s3 + $0x18] sm:$0xff] %v468
    %485 = vst [vmem:[%s3 + $0x20] sm:$0xff] %v469
    %486 = vst [vmem:[%s3 + $0x28] sm:$0xff] %v470
    %487 = vst [vmem:[%s3 + $0x30] sm:$0xff] %v471
    %488 = vst [vmem:[%s3 + $0x38] sm:$0xff] %v472
    %489 = vst [vmem:[%s3 + $0x40] sm:$0xff] %v473
    %490 = vst [vmem:[%s3 + $0x48] sm:$0xff] %v474
    %491 = vst [vmem:[%s3 + $0x50] sm:$0xff] %v475
    %492 = vst [vmem:[%s3 + $0x58] sm:$0xff] %v476
    %493 = vst [vmem:[%s3 + $0x60] sm:$0xff] %v477
    %494 = vst [vmem:[%s3 + $0x68] sm:$0xff] %v478
    %495 = vst [vmem:[%s3 + $0x70] sm:$0xff] %v479
    %496 = vst [vmem:[%s3 + $0x78] sm:$0xff] %v480
  $region17: #{labrbf_forward.2} parent=0 // pred_fallthru
    _
  %p497 = scmp.ne.s32.totalorder 0, 0
  // Predicated region
  $region18: #{labrbf_forward.2} parent=0 // pred_check
    %p498 = pneg %p497
  $region19: #{labrbf_forward.2} parent=0 // pred_check_branch
    %500 = sbr.rel (%p498) target = $region21
  $region20: #{labrbf_forward.2} parent=0 // pred_region
    %501 = vst [vmem:[%s3] sm:$0xff] %v395
    %502 = vst [vmem:[%s3 + $0x8] sm:$0xff] %v397
    %503 = vst [vmem:[%s3 + $0x10] sm:$0xff] %v399
    %504 = vst [vmem:[%s3 + $0x18] sm:$0xff] %v401
    %505 = vst [vmem:[%s3 + $0x20] sm:$0xff] %v403
    %506 = vst [vmem:[%s3 + $0x28] sm:$0xff] %v405
    %507 = vst [vmem:[%s3 + $0x30] sm:$0xff] %v407
    %508 = vst [vmem:[%s3 + $0x38] sm:$0xff] %v409
    %509 = vst [vmem:[%s3 + $0x40] sm:$0xff] %v411
    %510 = vst [vmem:[%s3 + $0x48] sm:$0xff] %v413
    %511 = vst [vmem:[%s3 + $0x50] sm:$0xff] %v415
    %512 = vst [vmem:[%s3 + $0x58] sm:$0xff] %v417
    %513 = vst [vmem:[%s3 + $0x60] sm:$0xff] %v419
    %514 = vst [vmem:[%s3 + $0x68] sm:$0xff] %v421
    %515 = vst [vmem:[%s3 + $0x70] sm:$0xff] %v423
    %516 = vst [vmem:[%s3 + $0x78] sm:$0xff] %v425
  $region21: #{labrbf_forward.2} parent=0 // pred_fallthru
    _
  // Predicated region
  $region22: #{labrbf_forward.2} parent=0 // pred_check
    _
  $region23: #{labrbf_forward.2} parent=0 // pred_check_branch
    %518 = sbr.rel (0) target = $region25
  $region24: #{labrbf_forward.2} parent=0 // pred_region
    _
  $region25: #{labrbf_forward.2} parent=0 // pred_fallthru
    _
  // Predicated region
  $region26: #{labrbf_forward.2} parent=0 // pred_check
    _
  $region27: #{labrbf_forward.2} parent=0 // pred_check_branch
    %520 = sbr.rel (0) target = $region29
  $region28: #{labrbf_forward.2} parent=0 // pred_region
    _
  $region29: #{labrbf_forward.2} parent=0 // pred_fallthru
    _

// kernel: labrbf_forward.3
$region0: #{labrbf_forward.3}
  #allocation0 [shape = 'u32[]', space=smem, size = 0x4, offset = 0x4, fixed_abs, tag = 'smem constant byte address 0x4 - core index']
  #allocation1 [shape = 'u32[72,128]{1,0:T(1,128)}', space=vmem, size = 0x9000, scoped, tag = 'internal scratch']
  #allocation2 [shape = 'f32[24,128]{1,0:T(8,128)}', space=vmem, size = 0x3000, scoped, tag = 'scratch operand']
  #allocation3 [shape = 'f32[1,128]{1,0:T(1,128)}', space=vmem, size = 0x200, scoped, tag = 'scratch operand']
  %s0 = inlined_call_operand.vmem [shape: f32[8,128], index: 0, kind: input, shape index: {}]
  %s1 = inlined_call_operand.vmem [shape: f32[8,128], index: 1, kind: input, shape index: {}]
  %s2 = inlined_call_operand.vmem [shape: f32[8,128], index: 2, kind: input, shape index: {}]
  %s3 = inlined_call_operand.vmem [shape: f32[1,128], index: 3, kind: input, shape index: {}]
  %s4 = inlined_call_operand.vmem [shape: f32[1,128], index: 4, kind: output, shape index: {}]
  %s5 = sld [smem:[#allocation0]]
  $region34: #{labrbf_forward.3} parent=0
    _
  %s7 = ssub.s32 1, %s5
  %s8 = scalar_select 0, %s7, %s5
  // Predicated region
  $region2: #{labrbf_forward.3} parent=0 // pred_check
    _
  $region3: #{labrbf_forward.3} parent=0 // pred_check_branch
    %10 = sbr.rel (0) target = $region5
  $region4: #{labrbf_forward.3} parent=0 // pred_region
    _
  $region5: #{labrbf_forward.3} parent=0 // pred_fallthru
    _
  // Predicated region
  $region6: #{labrbf_forward.3} parent=0 // pred_check
    _
  $region7: #{labrbf_forward.3} parent=0 // pred_check_branch
    %12 = sbr.rel (0) target = $region9
  $region8: #{labrbf_forward.3} parent=0 // pred_region
    _
  $region9: #{labrbf_forward.3} parent=0 // pred_fallthru
    _
  // Predicated region
  $region10: #{labrbf_forward.3} parent=0 // pred_check
    _
  $region11: #{labrbf_forward.3} parent=0 // pred_check_branch
    %14 = sbr.rel (0) target = $region13
  $region12: #{labrbf_forward.3} parent=0 // pred_region
    _
  $region13: #{labrbf_forward.3} parent=0 // pred_fallthru
    _
  // Predicated region
  $region14: #{labrbf_forward.3} parent=0 // pred_check
    _
  $region15: #{labrbf_forward.3} parent=0 // pred_check_branch
    %16 = sbr.rel (0) target = $region17
  $region16: #{labrbf_forward.3} parent=0 // pred_region
    _
  $region17: #{labrbf_forward.3} parent=0 // pred_fallthru
    _
  %p17 = scmp.eq.s32.totalorder 0, 0
  // Predicated region
  $region18: #{labrbf_forward.3} parent=0 // pred_check
    %p18 = pneg %p17
  $region19: #{labrbf_forward.3} parent=0 // pred_check_branch
    %20 = sbr.rel (%p18) target = $region21
  $region20: #{labrbf_forward.3} parent=0 // pred_region
    %v21 = vld [vmem:[%s2] sm:$0xff]
    %v22 = vmul.f32 %v21, %v21
    %v23 = vmul.f32 %v21, -2.0
    %24 = vst [vmem:[#allocation2] sm:$0xff] %v22
    %25 = vst [vmem:[#allocation2 + $0x8] sm:$0xff] %v23
    %26 = vst [vmem:[#allocation2 + $0x10] sm:$0xff] 1.0
    %27 = vst [vmem:[#allocation3] sm:$0x1] 0.0
  $region21: #{labrbf_forward.3} parent=0 // pred_fallthru
    _
  %v28 = vld [vmem:[%s0] sm:$0xff]
  %v29 = vmax.f32 %v28, 0.0
  %v30 = vadd.f32 %v29, 0.0001
  %v31 = vld [vmem:[%s1] sm:$0xff]
  %v32 = vmul.f32 %v30, %v30
  %v33 = vmul.f32 %v32, %v31
  %v34 = vmul.f32 %v31, %v31
  %v35 = vmul.f32 %v32, %v34
  %v36 = vld [vmem:[#allocation2] sm:$0xff]
  %v37 = vld [vmem:[#allocation2 + $0x8] sm:$0xff]
  %v38 = vld [vmem:[#allocation2 + $0x10] sm:$0xff]
  %39 = vxpose.xlu0.b32.start [1/16] %v32, 128
  %40 = vxpose.xlu0.b32.cont [2/16] %v33, 128
  %41 = vxpose.xlu0.b32.cont [3/16] %v35, 128
  %42 = vxpose.xlu0.b32.cont [4/16] 0.0, 128
  %43 = vxpose.xlu0.b32.cont [5/16] 0.0, 128
  %44 = vxpose.xlu0.b32.cont [6/16] 0.0, 128
  %45 = vxpose.xlu0.b32.cont [7/16] 0.0, 128
  %46 = vxpose.xlu0.b32.cont [8/16] 0.0, 128
  %47 = vxpose.xlu0.b32.cont [9/16] 0.0, 128
  %48 = vxpose.xlu0.b32.cont [10/16] 0.0, 128
  %49 = vxpose.xlu0.b32.cont [11/16] 0.0, 128
  %50 = vxpose.xlu0.b32.cont [12/16] 0.0, 128
  %51 = vxpose.xlu0.b32.cont [13/16] 0.0, 128
  %52 = vxpose.xlu0.b32.cont [14/16] 0.0, 128
  %53 = vxpose.xlu0.b32.cont [15/16] 0.0, 128
  %54 = vxpose.xlu0.b32.end [16/16] 0.0, 128
  %v55 = vpop.trf.xlu0
  %v56 = vpop.trf.xlu0
  %v57 = vpop.trf.xlu0
  %v58 = vpop.trf.xlu0
  %v59 = vpop.trf.xlu0
  %v60 = vpop.trf.xlu0
  %v61 = vpop.trf.xlu0
  %v62 = vpop.trf.xlu0
  %v63 = vpop.trf.xlu0
  %v64 = vpop.trf.xlu0
  %v65 = vpop.trf.xlu0
  %v66 = vpop.trf.xlu0
  %v67 = vpop.trf.xlu0
  %v68 = vpop.trf.xlu0
  %v69 = vpop.trf.xlu0
  %v70 = vpop.trf.xlu0
  %vm71 = vcmask 195584
  %v73 = vsel %vm71, %v55, 0
  %v76 = vsel %vm71, %v56, 0
  %v79 = vsel %vm71, %v57, 0
  %v82 = vsel %vm71, %v58, 0
  %v85 = vsel %vm71, %v59, 0
  %v88 = vsel %vm71, %v60, 0
  %v91 = vsel %vm71, %v61, 0
  %v94 = vsel %vm71, %v62, 0
  %v97 = vsel %vm71, %v63, 0
  %v100 = vsel %vm71, %v64, 0
  %v103 = vsel %vm71, %v65, 0
  %v106 = vsel %vm71, %v66, 0
  %v109 = vsel %vm71, %v67, 0
  %v112 = vsel %vm71, %v68, 0
  %v115 = vsel %vm71, %v69, 0
  %v118 = vsel %vm71, %v70, 0
  %120 = vmatpush.msra.mxu0 0.0
  %121 = vmatpush.msra.mxu0 0.0
  %122 = vmatpush.msra.mxu0 0.0
  %123 = vmatpush.msra.mxu0 0.0
  %124 = vmatpush.msra.mxu0 0.0
  %125 = vmatpush.msra.mxu0 0.0
  %126 = vmatpush.msra.mxu0 0.0
  %127 = vmatpush.msra.mxu0 0.0
  %128 = vmatpush.msra.mxu0 0.0
  %129 = vmatpush.msra.mxu0 0.0
  %130 = vmatpush.msra.mxu0 0.0
  %131 = vmatpush.msra.mxu0 0.0
  %132 = vmatpush.msra.mxu0 0.0
  %133 = vmatpush.msra.mxu0 %v38
  %134 = vmatpush.msra.mxu0 %v37
  %135 = vmatpush.msra.mxu0 %v36
  %136 = vmatmul.f32.gmra.mxu0 %v73
  %v137 = vpop.f32.mrf.mxu0
  %v138 = vadd.f32 0.0, %v137
  %139 = vmatmul.f32.gmra.mxu0 %v76
  %v140 = vpop.f32.mrf.mxu0
  %v141 = vadd.f32 0.0, %v140
  %142 = vmatmul.f32.gmra.mxu0 %v79
  %v143 = vpop.f32.mrf.mxu0
  %v144 = vadd.f32 0.0, %v143
  %145 = vmatmul.f32.gmra.mxu0 %v82
  %v146 = vpop.f32.mrf.mxu0
  %v147 = vadd.f32 0.0, %v146
  %148 = vmatmul.f32.gmra.mxu0 %v85
  %v149 = vpop.f32.mrf.mxu0
  %v150 = vadd.f32 0.0, %v149
  %151 = vmatmul.f32.gmra.mxu0 %v88
  %v152 = vpop.f32.mrf.mxu0
  %v153 = vadd.f32 0.0, %v152
  %154 = vmatmul.f32.gmra.mxu0 %v91
  %v155 = vpop.f32.mrf.mxu0
  %v156 = vadd.f32 0.0, %v155
  %157 = vmatmul.f32.gmra.mxu0 %v94
  %v158 = vpop.f32.mrf.mxu0
  %v159 = vadd.f32 0.0, %v158
  %160 = vmatmul.f32.gmra.mxu0 %v97
  %v161 = vpop.f32.mrf.mxu0
  %v162 = vadd.f32 0.0, %v161
  %163 = vmatmul.f32.gmra.mxu0 %v100
  %v164 = vpop.f32.mrf.mxu0
  %v165 = vadd.f32 0.0, %v164
  %166 = vmatmul.f32.gmra.mxu0 %v103
  %v167 = vpop.f32.mrf.mxu0
  %v168 = vadd.f32 0.0, %v167
  %169 = vmatmul.f32.gmra.mxu0 %v106
  %v170 = vpop.f32.mrf.mxu0
  %v171 = vadd.f32 0.0, %v170
  %172 = vmatmul.f32.gmra.mxu0 %v109
  %v173 = vpop.f32.mrf.mxu0
  %v174 = vadd.f32 0.0, %v173
  %175 = vmatmul.f32.gmra.mxu0 %v112
  %v176 = vpop.f32.mrf.mxu0
  %v177 = vadd.f32 0.0, %v176
  %178 = vmatmul.f32.gmra.mxu0 %v115
  %v179 = vpop.f32.mrf.mxu0
  %v180 = vadd.f32 0.0, %v179
  %181 = vmatmul.f32.gmra.mxu0 %v118
  %v182 = vpop.f32.mrf.mxu0
  %v183 = vadd.f32 0.0, %v182
  %184 = vdwg.mxu0
  %v185 = vmax.f32 %v138, 0.0
  %v186 = vmax.f32 %v141, 0.0
  %v187 = vmax.f32 %v144, 0.0
  %v188 = vmax.f32 %v147, 0.0
  %v189 = vmax.f32 %v150, 0.0
  %v190 = vmax.f32 %v153, 0.0
  %v191 = vmax.f32 %v156, 0.0
  %v192 = vmax.f32 %v159, 0.0
  %v193 = vmax.f32 %v162, 0.0
  %v194 = vmax.f32 %v165, 0.0
  %v195 = vmax.f32 %v168, 0.0
  %v196 = vmax.f32 %v171, 0.0
  %v197 = vmax.f32 %v174, 0.0
  %v198 = vmax.f32 %v177, 0.0
  %v199 = vmax.f32 %v180, 0.0
  %v200 = vmax.f32 %v183, 0.0
  %v201 = vrsqrt.pop %v185
  %v202 = vmul.f32 %v201, %v185
  %v203 = vmul.f32 %v202, %v201
  %v204 = vmul.f32 0.5, %v203
  %v205 = vsub.f32 1.5, %v204
  %v206 = vmul.f32 %v201, %v205
  %v207 = vmul.f32 %v185, %v206
  %vm208 = vcmp.eq.f32.partialorder %v185, inf
  %v209 = vsel %vm208, %v185, %v207
  %vm210 = vcmp.eq.f32.partialorder %v185, 0.0
  %v211 = vand.u32 %v185, 2147483648
  %v212 = vsel %vm210, %v211, %v209
  %v213 = vrsqrt.pop %v186
  %v214 = vmul.f32 %v213, %v186
  %v215 = vmul.f32 %v214, %v213
  %v216 = vmul.f32 0.5, %v215
  %v217 = vsub.f32 1.5, %v216
  %v218 = vmul.f32 %v213, %v217
  %v219 = vmul.f32 %v186, %v218
  %vm220 = vcmp.eq.f32.partialorder %v186, inf
  %v221 = vsel %vm220, %v186, %v219
  %vm222 = vcmp.eq.f32.partialorder %v186, 0.0
  %v223 = vand.u32 %v186, 2147483648
  %v224 = vsel %vm222, %v223, %v221
  %v225 = vrsqrt.pop %v187
  %v226 = vmul.f32 %v225, %v187
  %v227 = vmul.f32 %v226, %v225
  %v228 = vmul.f32 0.5, %v227
  %v229 = vsub.f32 1.5, %v228
  %v230 = vmul.f32 %v225, %v229
  %v231 = vmul.f32 %v187, %v230
  %vm232 = vcmp.eq.f32.partialorder %v187, inf
  %v233 = vsel %vm232, %v187, %v231
  %vm234 = vcmp.eq.f32.partialorder %v187, 0.0
  %v235 = vand.u32 %v187, 2147483648
  %v236 = vsel %vm234, %v235, %v233
  %v237 = vrsqrt.pop %v188
  %v238 = vmul.f32 %v237, %v188
  %v239 = vmul.f32 %v238, %v237
  %v240 = vmul.f32 0.5, %v239
  %v241 = vsub.f32 1.5, %v240
  %v242 = vmul.f32 %v237, %v241
  %v243 = vmul.f32 %v188, %v242
  %vm244 = vcmp.eq.f32.partialorder %v188, inf
  %v245 = vsel %vm244, %v188, %v243
  %vm246 = vcmp.eq.f32.partialorder %v188, 0.0
  %v247 = vand.u32 %v188, 2147483648
  %v248 = vsel %vm246, %v247, %v245
  %v249 = vrsqrt.pop %v189
  %v250 = vmul.f32 %v249, %v189
  %v251 = vmul.f32 %v250, %v249
  %v252 = vmul.f32 0.5, %v251
  %v253 = vsub.f32 1.5, %v252
  %v254 = vmul.f32 %v249, %v253
  %v255 = vmul.f32 %v189, %v254
  %vm256 = vcmp.eq.f32.partialorder %v189, inf
  %v257 = vsel %vm256, %v189, %v255
  %vm258 = vcmp.eq.f32.partialorder %v189, 0.0
  %v259 = vand.u32 %v189, 2147483648
  %v260 = vsel %vm258, %v259, %v257
  %v261 = vrsqrt.pop %v190
  %v262 = vmul.f32 %v261, %v190
  %v263 = vmul.f32 %v262, %v261
  %v264 = vmul.f32 0.5, %v263
  %v265 = vsub.f32 1.5, %v264
  %v266 = vmul.f32 %v261, %v265
  %v267 = vmul.f32 %v190, %v266
  %vm268 = vcmp.eq.f32.partialorder %v190, inf
  %v269 = vsel %vm268, %v190, %v267
  %vm270 = vcmp.eq.f32.partialorder %v190, 0.0
  %v271 = vand.u32 %v190, 2147483648
  %v272 = vsel %vm270, %v271, %v269
  %v273 = vrsqrt.pop %v191
  %v274 = vmul.f32 %v273, %v191
  %v275 = vmul.f32 %v274, %v273
  %v276 = vmul.f32 0.5, %v275
  %v277 = vsub.f32 1.5, %v276
  %v278 = vmul.f32 %v273, %v277
  %v279 = vmul.f32 %v191, %v278
  %vm280 = vcmp.eq.f32.partialorder %v191, inf
  %v281 = vsel %vm280, %v191, %v279
  %vm282 = vcmp.eq.f32.partialorder %v191, 0.0
  %v283 = vand.u32 %v191, 2147483648
  %v284 = vsel %vm282, %v283, %v281
  %v285 = vrsqrt.pop %v192
  %v286 = vmul.f32 %v285, %v192
  %v287 = vmul.f32 %v286, %v285
  %v288 = vmul.f32 0.5, %v287
  %v289 = vsub.f32 1.5, %v288
  %v290 = vmul.f32 %v285, %v289
  %v291 = vmul.f32 %v192, %v290
  %vm292 = vcmp.eq.f32.partialorder %v192, inf
  %v293 = vsel %vm292, %v192, %v291
  %vm294 = vcmp.eq.f32.partialorder %v192, 0.0
  %v295 = vand.u32 %v192, 2147483648
  %v296 = vsel %vm294, %v295, %v293
  %v297 = vrsqrt.pop %v193
  %v298 = vmul.f32 %v297, %v193
  %v299 = vmul.f32 %v298, %v297
  %v300 = vmul.f32 0.5, %v299
  %v301 = vsub.f32 1.5, %v300
  %v302 = vmul.f32 %v297, %v301
  %v303 = vmul.f32 %v193, %v302
  %vm304 = vcmp.eq.f32.partialorder %v193, inf
  %v305 = vsel %vm304, %v193, %v303
  %vm306 = vcmp.eq.f32.partialorder %v193, 0.0
  %v307 = vand.u32 %v193, 2147483648
  %v308 = vsel %vm306, %v307, %v305
  %v309 = vrsqrt.pop %v194
  %v310 = vmul.f32 %v309, %v194
  %v311 = vmul.f32 %v310, %v309
  %v312 = vmul.f32 0.5, %v311
  %v313 = vsub.f32 1.5, %v312
  %v314 = vmul.f32 %v309, %v313
  %v315 = vmul.f32 %v194, %v314
  %vm316 = vcmp.eq.f32.partialorder %v194, inf
  %v317 = vsel %vm316, %v194, %v315
  %vm318 = vcmp.eq.f32.partialorder %v194, 0.0
  %v319 = vand.u32 %v194, 2147483648
  %v320 = vsel %vm318, %v319, %v317
  %v321 = vrsqrt.pop %v195
  %v322 = vmul.f32 %v321, %v195
  %v323 = vmul.f32 %v322, %v321
  %v324 = vmul.f32 0.5, %v323
  %v325 = vsub.f32 1.5, %v324
  %v326 = vmul.f32 %v321, %v325
  %v327 = vmul.f32 %v195, %v326
  %vm328 = vcmp.eq.f32.partialorder %v195, inf
  %v329 = vsel %vm328, %v195, %v327
  %vm330 = vcmp.eq.f32.partialorder %v195, 0.0
  %v331 = vand.u32 %v195, 2147483648
  %v332 = vsel %vm330, %v331, %v329
  %v333 = vrsqrt.pop %v196
  %v334 = vmul.f32 %v333, %v196
  %v335 = vmul.f32 %v334, %v333
  %v336 = vmul.f32 0.5, %v335
  %v337 = vsub.f32 1.5, %v336
  %v338 = vmul.f32 %v333, %v337
  %v339 = vmul.f32 %v196, %v338
  %vm340 = vcmp.eq.f32.partialorder %v196, inf
  %v341 = vsel %vm340, %v196, %v339
  %vm342 = vcmp.eq.f32.partialorder %v196, 0.0
  %v343 = vand.u32 %v196, 2147483648
  %v344 = vsel %vm342, %v343, %v341
  %v345 = vrsqrt.pop %v197
  %v346 = vmul.f32 %v345, %v197
  %v347 = vmul.f32 %v346, %v345
  %v348 = vmul.f32 0.5, %v347
  %v349 = vsub.f32 1.5, %v348
  %v350 = vmul.f32 %v345, %v349
  %v351 = vmul.f32 %v197, %v350
  %vm352 = vcmp.eq.f32.partialorder %v197, inf
  %v353 = vsel %vm352, %v197, %v351
  %vm354 = vcmp.eq.f32.partialorder %v197, 0.0
  %v355 = vand.u32 %v197, 2147483648
  %v356 = vsel %vm354, %v355, %v353
  %v357 = vrsqrt.pop %v198
  %v358 = vmul.f32 %v357, %v198
  %v359 = vmul.f32 %v358, %v357
  %v360 = vmul.f32 0.5, %v359
  %v361 = vsub.f32 1.5, %v360
  %v362 = vmul.f32 %v357, %v361
  %v363 = vmul.f32 %v198, %v362
  %vm364 = vcmp.eq.f32.partialorder %v198, inf
  %v365 = vsel %vm364, %v198, %v363
  %vm366 = vcmp.eq.f32.partialorder %v198, 0.0
  %v367 = vand.u32 %v198, 2147483648
  %v368 = vsel %vm366, %v367, %v365
  %v369 = vrsqrt.pop %v199
  %v370 = vmul.f32 %v369, %v199
  %v371 = vmul.f32 %v370, %v369
  %v372 = vmul.f32 0.5, %v371
  %v373 = vsub.f32 1.5, %v372
  %v374 = vmul.f32 %v369, %v373
  %v375 = vmul.f32 %v199, %v374
  %vm376 = vcmp.eq.f32.partialorder %v199, inf
  %v377 = vsel %vm376, %v199, %v375
  %vm378 = vcmp.eq.f32.partialorder %v199, 0.0
  %v379 = vand.u32 %v199, 2147483648
  %v380 = vsel %vm378, %v379, %v377
  %v381 = vrsqrt.pop %v200
  %v382 = vmul.f32 %v381, %v200
  %v383 = vmul.f32 %v382, %v381
  %v384 = vmul.f32 0.5, %v383
  %v385 = vsub.f32 1.5, %v384
  %v386 = vmul.f32 %v381, %v385
  %v387 = vmul.f32 %v200, %v386
  %vm388 = vcmp.eq.f32.partialorder %v200, inf
  %v389 = vsel %vm388, %v200, %v387
  %vm390 = vcmp.eq.f32.partialorder %v200, 0.0
  %v391 = vand.u32 %v200, 2147483648
  %v392 = vsel %vm390, %v391, %v389
  %v393 = vsub.f32 0.0, %v212
  %v394 = vsub.f32 0.0, %v224
  %v395 = vsub.f32 0.0, %v236
  %v396 = vsub.f32 0.0, %v248
  %v397 = vsub.f32 0.0, %v260
  %v398 = vsub.f32 0.0, %v272
  %v399 = vsub.f32 0.0, %v284
  %v400 = vsub.f32 0.0, %v296
  %v401 = vsub.f32 0.0, %v308
  %v402 = vsub.f32 0.0, %v320
  %v403 = vsub.f32 0.0, %v332
  %v404 = vsub.f32 0.0, %v344
  %v405 = vsub.f32 0.0, %v356
  %v406 = vsub.f32 0.0, %v368
  %v407 = vsub.f32 0.0, %v380
  %v408 = vsub.f32 0.0, %v392
  %v409 = vmul.f32 %v393, 1.442695
  %v410 = vpow.pop %v409
  %v411 = vmul.f32 %v394, 1.442695
  %v412 = vpow.pop %v411
  %v413 = vmul.f32 %v395, 1.442695
  %v414 = vpow.pop %v413
  %v415 = vmul.f32 %v396, 1.442695
  %v416 = vpow.pop %v415
  %v417 = vmul.f32 %v397, 1.442695
  %v418 = vpow.pop %v417
  %v419 = vmul.f32 %v398, 1.442695
  %v420 = vpow.pop %v419
  %v421 = vmul.f32 %v399, 1.442695
  %v422 = vpow.pop %v421
  %v423 = vmul.f32 %v400, 1.442695
  %v424 = vpow.pop %v423
  %v425 = vmul.f32 %v401, 1.442695
  %v426 = vpow.pop %v425
  %v427 = vmul.f32 %v402, 1.442695
  %v428 = vpow.pop %v427
  %v429 = vmul.f32 %v403, 1.442695
  %v430 = vpow.pop %v429
  %v431 = vmul.f32 %v404, 1.442695
  %v432 = vpow.pop %v431
  %v433 = vmul.f32 %v405, 1.442695
  %v434 = vpow.pop %v433
  %v435 = vmul.f32 %v406, 1.442695
  %v436 = vpow.pop %v435
  %v437 = vmul.f32 %v407, 1.442695
  %v438 = vpow.pop %v437
  %v439 = vmul.f32 %v408, 1.442695
  %v440 = vpow.pop %v439
  %v441 = vld [vmem:[#allocation3] sm:$0x1]
  %v442 = vld [vmem:[%s3] sm:$0x1]
  %443 = vmatpush.msra.mxu0 %v440
  %444 = vmatpush.msra.mxu0 %v438
  %445 = vmatpush.msra.mxu0 %v436
  %446 = vmatpush.msra.mxu0 %v434
  %447 = vmatpush.msra.mxu0 %v432
  %448 = vmatpush.msra.mxu0 %v430
  %449 = vmatpush.msra.mxu0 %v428
  %450 = vmatpush.msra.mxu0 %v426
  %451 = vmatpush.msra.mxu0 %v424
  %452 = vmatpush.msra.mxu0 %v422
  %453 = vmatpush.msra.mxu0 %v420
  %454 = vmatpush.msra.mxu0 %v418
  %455 = vmatpush.msra.mxu0 %v416
  %456 = vmatpush.msra.mxu0 %v414
  %457 = vmatpush.msra.mxu0 %v412
  %458 = vmatpush.msra.mxu0 %v410
  %459 = vmatmul.f32.gmra.mxu0 %v442
  %v460 = vpop.f32.mrf.mxu0
  %v461 = vadd.f32 0.0, %v460
  %462 = vdwg.mxu0
  %v463 = vadd.f32 %v441, %v461
  %464 = vst [vmem:[#allocation3] sm:$0x1] %v463
  // Predicated region
  $region22: #{labrbf_forward.3} parent=0 // pred_check
    %p465 = pneg %p17
  $region23: #{labrbf_forward.3} parent=0 // pred_check_branch
    %467 = sbr.rel (%p465) target = $region25
  $region24: #{labrbf_forward.3} parent=0 // pred_region
    %v468 = vld [vmem:[#allocation3] sm:$0x1]
    %469 = vst [vmem:[%s4] sm:$0x1] %v468
  $region25: #{labrbf_forward.3} parent=0 // pred_fallthru
    _
  // Predicated region
  $region26: #{labrbf_forward.3} parent=0 // pred_check
    _
  $region27: #{labrbf_forward.3} parent=0 // pred_check_branch
    %471 = sbr.rel (0) target = $region29
  $region28: #{labrbf_forward.3} parent=0 // pred_region
    _
  $region29: #{labrbf_forward.3} parent=0 // pred_fallthru
    _
  // Predicated region
  $region30: #{labrbf_forward.3} parent=0 // pred_check
    _
  $region31: #{labrbf_forward.3} parent=0 // pred_check_branch
    %473 = sbr.rel (0) target = $region33
  $region32: #{labrbf_forward.3} parent=0 // pred_region
    _
  $region33: #{labrbf_forward.3} parent=0 // pred_fallthru
    _

</llo_original>
